<compile_context>
chip_gen: v7x
topology: tpu7x:2x2x1
jax: 0.10.0
libtpu: 0.0.40
codegen_flags: <defaults>
</compile_context>

<pallas_src>
import jax
import jax.numpy as jnp
from jax.experimental import pallas as pl
from jax.experimental.pallas import tpu as pltpu


# -----------------------------------------------------------------------------
# Kernel
# -----------------------------------------------------------------------------


def _make_kernel(B, C, D, L, Npad):
    BL = B * L

    def kernel(
        z_ref,                    # (B, D)
        fcw_ref,                  # (D, C*L)
        fcb_ref,                  # (1, C*L)
        w1_ref, b1_ref,           # (3, 40, C),  (40, 1)
        w2_ref, b2_ref,           # (3, 40, 40), (40, 1)
        w3_ref, b3_ref,           # (3, 40, 40), (40, 1)
        w4_ref, b4_ref,           # (3, 8, 40),  (8, 1)
        out_ref,                  # (8, Npad)
    ):
        f32 = jnp.float32

        # Segment-boundary lane masks, built in-kernel (hoisted above all layers).
        pos = jax.lax.broadcasted_iota(jnp.int32, (1, Npad), 1)
        l_idx = pos % L
        m_not_last = (l_idx != (L - 1)).astype(f32)   # zero at last elem of each segment
        m_not_first = (l_idx != 0).astype(f32)        # zero at first elem of each segment

        # fc(z): one (B, D) @ (D, C*L) matmul for the whole batch, then the
        # decoder's first ReLU (elementwise, layout independent).
        h = jnp.dot(z_ref[...], fcw_ref[...], preferred_element_type=f32)
        h = jnp.maximum(h + fcb_ref[...], 0.0)                      # (B, C*L)

        # Single structured relayout: (B, C*L) -> (C, B, L) -> (C, B*L).
        x = h.reshape(B, C, L)
        x = jnp.transpose(x, (1, 0, 2))
        x = x.reshape(C, BL)
        if Npad > BL:
            # Lane-pad once so every conv layer works on a lane-dense slab and
            # the final store is an unmasked full tile.
            x = jnp.concatenate([x, jnp.zeros((C, Npad - BL), f32)], axis=1)

        def conv_t(x, w_ref, b_ref):
            # ConvTranspose1d(k=3, stride=1, pad=1):
            #   y[t] = W0 @ x[t+1] + W1 @ x[t] + W2 @ x[t-1]   (zeros at segment edges)
            x_left = pltpu.roll(x, shift=Npad - 1, axis=1) * m_not_last
            x_right = pltpu.roll(x, shift=1, axis=1) * m_not_first
            y = jnp.dot(w_ref[1], x, preferred_element_type=f32)
            y = y + jnp.dot(w_ref[0], x_left, preferred_element_type=f32)
            y = y + jnp.dot(w_ref[2], x_right, preferred_element_type=f32)
            return y + b_ref[...]

        # decoder = ReLU -> convT -> ReLU -> convT -> ReLU -> convT -> ReLU -> convT,
        # followed by the module's trailing F.relu (fused into the last maximum).
        x = jnp.maximum(conv_t(x, w1_ref, b1_ref), 0.0)             # (40, Npad)
        x = jnp.maximum(conv_t(x, w2_ref, b2_ref), 0.0)             # (40, Npad)
        x = jnp.maximum(conv_t(x, w3_ref, b3_ref), 0.0)             # (40, Npad)
        x = jnp.maximum(conv_t(x, w4_ref, b4_ref), 0.0)             # (8, Npad)

        out_ref[...] = x                                            # unmasked tile store

    return kernel


# -----------------------------------------------------------------------------
# Wrapper
# -----------------------------------------------------------------------------


def cnn_decoder_forward(z, kparams, latent_channel, seq_length):
    """z: (B, latent_dim) f32.  Returns (B, 1, seq_length) f32."""
    B, D = z.shape
    C, L = latent_channel, seq_length
    BL = B * L
    Npad = pl.cdiv(BL, 128) * 128               # lane-dense padded width
    O4_pad = kparams["b4"].shape[0]             # final channel count padded to 8

    order = ["fc_w", "fc_b", "w1", "b1", "w2", "b2", "w3", "b3", "w4", "b4"]
    args = [z] + [kparams[k] for k in order]

    in_specs = [pl.BlockSpec(memory_space=pltpu.MemorySpace.VMEM) for _ in args]
    out_specs = pl.BlockSpec(memory_space=pltpu.MemorySpace.VMEM)

    out = pl.pallas_call(
        _make_kernel(B, C, D, L, Npad),
        out_shape=jax.ShapeDtypeStruct((O4_pad, Npad), jnp.float32),
        in_specs=in_specs,
        out_specs=out_specs,
    )(*args)

    # Row 0 is the single real output channel laid out as concatenated batch
    # segments: element b*L + l -> (b, 0, l).
    return out[0, :BL].reshape(B, 1, L)


# -----------------------------------------------------------------------------
# Parameter construction (PyTorch-shaped) + kernel-layout prep
# -----------------------------------------------------------------------------


def init_raw_params(key, latent_dim, latent_channel, seq_length):
    ks = jax.random.split(key, 10)
    s = 0.1
    raw = {
        # nn.Linear(latent_dim, latent_channel * seq_length): weight (out, in)
        "fc_w": s * jax.random.normal(ks[0], (latent_channel * seq_length, latent_dim), jnp.float32),
        "fc_b": s * jax.random.normal(ks[1], (latent_channel * seq_length,), jnp.float32),
        # ConvTranspose1d weight shape: (in_channels, out_channels, kernel)
        "w1": s * jax.random.normal(ks[2], (latent_channel, 36, 3), jnp.float32),
        "b1": s * jax.random.normal(ks[3], (36,), jnp.float32),
        "w2": s * jax.random.normal(ks[4], (36, 36, 3), jnp.float32),
        "b2": s * jax.random.normal(ks[5], (36,), jnp.float32),
        "w3": s * jax.random.normal(ks[6], (36, 36, 3), jnp.float32),
        "b3": s * jax.random.normal(ks[7], (36,), jnp.float32),
        "w4": s * jax.random.normal(ks[8], (36, 1, 3), jnp.float32),
        "b4": s * jax.random.normal(ks[9], (1,), jnp.float32),
    }
    return raw


def prepare_kernel_params(raw, latent_channel, seq_length):
    """Repack PyTorch-shaped params into kernel layout (done once)."""
    C, L = latent_channel, seq_length

    def pad8(n):
        return max(8, ((n + 7) // 8) * 8)

    p = {
        "fc_w": raw["fc_w"].T,                       # (D, C*L)
        "fc_b": raw["fc_b"].reshape(1, C * L),       # (1, C*L)
    }

    in_ch = [C, 36, 36, 36]
    out_ch = [36, 36, 36, 1]
    prev_rows = C  # row count of the activation entering layer 1
    for idx, name in enumerate(("1", "2", "3", "4")):
        w = raw["w" + name]                          # (I, O, 3)
        b = raw["b" + name]                          # (O,)
        I, O = in_ch[idx], out_ch[idx]
        I_pad = prev_rows                            # matches activation rows
        O_pad = pad8(O)
        # taps stacked on a leading dim: tap 0 -> x[t+1], tap 1 -> x[t], tap 2 -> x[t-1]
        wt = jnp.zeros((3, O_pad, I_pad), jnp.float32)
        wt = wt.at[:, :O, :I].set(jnp.transpose(w, (2, 1, 0)))   # (3, O, I)
        bt = jnp.zeros((O_pad, 1), jnp.float32).at[:O, 0].set(b)
        p["w" + name] = wt
        p["b" + name] = bt
        prev_rows = O_pad
    return p


# -----------------------------------------------------------------------------
# Pure-JAX reference (mirrors the PyTorch module)
# -----------------------------------------------------------------------------


def conv_transpose1d_ref(x, w, b):
    # x: (B, I, L), w: (I, O, 3), b: (O,).  stride=1, padding=1, out_padding=0.
    xp = jnp.pad(x, ((0, 0), (0, 0), (1, 1)))
    y = (
        jnp.einsum("bil,io->bol", xp[:, :, 2:], w[:, :, 0])
        + jnp.einsum("bil,io->bol", xp[:, :, 1:-1], w[:, :, 1])
        + jnp.einsum("bil,io->bol", xp[:, :, :-2], w[:, :, 2])
    )
    return y + b[None, :, None]


def ref_forward(z, raw, latent_channel, seq_length):
    B = z.shape[0]
    x = z @ raw["fc_w"].T + raw["fc_b"]
    x = x.reshape(B, latent_channel, seq_length)
    x = jax.nn.relu(x)
    x = jax.nn.relu(conv_transpose1d_ref(x, raw["w1"], raw["b1"]))
    x = jax.nn.relu(conv_transpose1d_ref(x, raw["w2"], raw["b2"]))
    x = jax.nn.relu(conv_transpose1d_ref(x, raw["w3"], raw["b3"]))
    x = conv_transpose1d_ref(x, raw["w4"], raw["b4"])
    return jax.nn.relu(x)


# -----------------------------------------------------------------------------
# Main
# -----------------------------------------------------------------------------

if __name__ == "__main__":
    batch = 2
    latent_dim = 32
    latent_channel = 4
    seq_length = 16

    key = jax.random.PRNGKey(0)
    kz, kp = jax.random.split(key)
    z = jax.random.normal(kz, (batch, latent_dim), jnp.float32)

    raw = init_raw_params(kp, latent_dim, latent_channel, seq_length)
    kparams = prepare_kernel_params(raw, latent_channel, seq_length)

    out = cnn_decoder_forward(z, kparams, latent_channel, seq_length)
    out = jax.block_until_ready(out)

    ref = ref_forward(z, raw, latent_channel, seq_length)
    assert out.shape == (batch, 1, seq_length), out.shape
    assert jnp.allclose(out, ref, atol=1e-4, rtol=1e-4), float(jnp.max(jnp.abs(out - ref)))

    print("KERNEL_OK")
</pallas_src>

<mosaic_0001>
module attributes {stable_mosaic.version = 11 : i64} {
  func.func @kernel(%arg0: memref<2x32xf32, #tpu.memory_space<vmem>>, %arg1: memref<32x64xf32, #tpu.memory_space<vmem>>, %arg2: memref<1x64xf32, #tpu.memory_space<vmem>>, %arg3: memref<3x40x4xf32, #tpu.memory_space<vmem>>, %arg4: memref<40x1xf32, #tpu.memory_space<vmem>>, %arg5: memref<3x40x40xf32, #tpu.memory_space<vmem>>, %arg6: memref<40x1xf32, #tpu.memory_space<vmem>>, %arg7: memref<3x40x40xf32, #tpu.memory_space<vmem>>, %arg8: memref<40x1xf32, #tpu.memory_space<vmem>>, %arg9: memref<3x8x40xf32, #tpu.memory_space<vmem>>, %arg10: memref<8x1xf32, #tpu.memory_space<vmem>>, %arg11: memref<8x128xf32, #tpu.memory_space<vmem>>) attributes {dimension_semantics = [], scalar_prefetch = 0 : i64, scratch_operands = 0 : i64, tpu.core_type = #tpu.core_type<tc>} {
    %0 = tpu.iota {dimensions = array<i32: 1>} : vector<1x128xi32>
    %c16_i32 = arith.constant 16 : i32
    %c0_i32 = arith.constant 0 : i32
    %1 = arith.cmpi eq, %c16_i32, %c0_i32 : i32
    %c1_i32 = arith.constant 1 : i32
    %2 = arith.select %1, %c1_i32, %c16_i32 : i32
    %3 = vector.broadcast %2 : i32 to vector<1x128xi32>
    %4 = arith.remsi %0, %3 : vector<1x128xi32>
    %c0_i32_0 = arith.constant 0 : i32
    %5 = vector.broadcast %c0_i32_0 : i32 to vector<1x128xi32>
    %6 = arith.cmpi ne, %4, %5 : vector<1x128xi32>
    %c0_i32_1 = arith.constant 0 : i32
    %7 = vector.broadcast %c0_i32_1 : i32 to vector<1x128xi32>
    %8 = arith.cmpi slt, %4, %7 : vector<1x128xi32>
    %c0_i32_2 = arith.constant 0 : i32
    %9 = arith.cmpi slt, %2, %c0_i32_2 : i32
    %10 = vector.broadcast %9 : i1 to vector<1x128xi1>
    %11 = vector.broadcast %10 : vector<1x128xi1> to vector<1x128xi1>
    %12 = arith.xori %8, %11 : vector<1x128xi1>
    %13 = arith.andi %12, %6 : vector<1x128xi1>
    %14 = vector.broadcast %2 : i32 to vector<1x128xi32>
    %15 = arith.addi %4, %14 : vector<1x128xi32>
    %16 = arith.select %13, %15, %4 : vector<1x128xi1>, vector<1x128xi32>
    %c15_i32 = arith.constant 15 : i32
    %17 = vector.broadcast %c15_i32 : i32 to vector<1x128xi32>
    %18 = arith.cmpi ne, %16, %17 : vector<1x128xi32>
    %19 = arith.extui %18 : vector<1x128xi1> to vector<1x128xi32>
    %20 = arith.sitofp %19 : vector<1x128xi32> to vector<1x128xf32>
    %c0_i32_3 = arith.constant 0 : i32
    %21 = vector.broadcast %c0_i32_3 : i32 to vector<1x128xi32>
    %22 = arith.cmpi ne, %16, %21 : vector<1x128xi32>
    %23 = arith.extui %22 : vector<1x128xi1> to vector<1x128xi32>
    %24 = arith.sitofp %23 : vector<1x128xi32> to vector<1x128xf32>
    %c0 = arith.constant 0 : index
    %c0_4 = arith.constant 0 : index
    %25 = vector.load %arg0[%c0, %c0_4] : memref<2x32xf32, #tpu.memory_space<vmem>>, vector<2x32xf32>
    %c0_5 = arith.constant 0 : index
    %c0_6 = arith.constant 0 : index
    %26 = vector.load %arg1[%c0_5, %c0_6] : memref<32x64xf32, #tpu.memory_space<vmem>>, vector<32x64xf32>
    %cst = arith.constant dense<0.000000e+00> : vector<2x64xf32>
    %27 = tpu.matmul %25, %26, %cst {dimension_numbers = #tpu.dot_dimension_numbers<[1], [0], [0], [1], [0, 0, 1, 1], [], []>} : vector<2x32xf32>, vector<32x64xf32>, vector<2x64xf32> -> vector<2x64xf32>
    %c0_7 = arith.constant 0 : index
    %c0_8 = arith.constant 0 : index
    %28 = vector.load %arg2[%c0_7, %c0_8] : memref<1x64xf32, #tpu.memory_space<vmem>>, vector<1x64xf32>
    %29 = vector.broadcast %28 : vector<1x64xf32> to vector<2x64xf32>
    %30 = arith.addf %27, %29 : vector<2x64xf32>
    %cst_9 = arith.constant 0.000000e+00 : f32
    %31 = vector.broadcast %cst_9 : f32 to vector<2x64xf32>
    %32 = arith.maximumf %30, %31 : vector<2x64xf32>
    %33 = vector.shape_cast %32 : vector<2x64xf32> to vector<2x4x16xf32>
    %34 = tpu.transpose %33, [1, 0, 2] : vector<2x4x16xf32> -> vector<4x2x16xf32>
    %35 = vector.shape_cast %34 : vector<4x2x16xf32> to vector<4x32xf32>
    %cst_10 = arith.constant 0.000000e+00 : f32
    %36 = vector.broadcast %cst_10 : f32 to vector<4x96xf32>
    %37 = tpu.concatenate %35, %36 in 1 : vector<4x32xf32>, vector<4x96xf32> -> vector<4x128xf32>
    %c127_i32 = arith.constant 127 : i32
    %38 = tpu.dynamic_rotate %37 by %c127_i32 dim 1 : vector<4x128xf32>, i32 -> vector<4x128xf32>
    %39 = vector.broadcast %20 : vector<1x128xf32> to vector<4x128xf32>
    %40 = arith.mulf %38, %39 : vector<4x128xf32>
    %c1_i32_11 = arith.constant 1 : i32
    %41 = tpu.dynamic_rotate %37 by %c1_i32_11 dim 1 : vector<4x128xf32>, i32 -> vector<4x128xf32>
    %42 = vector.broadcast %24 : vector<1x128xf32> to vector<4x128xf32>
    %43 = arith.mulf %41, %42 : vector<4x128xf32>
    %c1 = arith.constant 1 : index
    %c0_12 = arith.constant 0 : index
    %c0_13 = arith.constant 0 : index
    %44 = vector.load %arg3[%c1, %c0_12, %c0_13] : memref<3x40x4xf32, #tpu.memory_space<vmem>>, vector<1x40x4xf32>
    %45 = vector.shape_cast %44 : vector<1x40x4xf32> to vector<40x4xf32>
    %cst_14 = arith.constant dense<0.000000e+00> : vector<40x128xf32>
    %46 = tpu.matmul %45, %37, %cst_14 {dimension_numbers = #tpu.dot_dimension_numbers<[1], [0], [0], [1], [0, 0, 1, 1], [], []>} : vector<40x4xf32>, vector<4x128xf32>, vector<40x128xf32> -> vector<40x128xf32>
    %c0_15 = arith.constant 0 : index
    %c0_16 = arith.constant 0 : index
    %c0_17 = arith.constant 0 : index
    %47 = vector.load %arg3[%c0_15, %c0_16, %c0_17] : memref<3x40x4xf32, #tpu.memory_space<vmem>>, vector<1x40x4xf32>
    %48 = vector.shape_cast %47 : vector<1x40x4xf32> to vector<40x4xf32>
    %cst_18 = arith.constant dense<0.000000e+00> : vector<40x128xf32>
    %49 = tpu.matmul %48, %40, %cst_18 {dimension_numbers = #tpu.dot_dimension_numbers<[1], [0], [0], [1], [0, 0, 1, 1], [], []>} : vector<40x4xf32>, vector<4x128xf32>, vector<40x128xf32> -> vector<40x128xf32>
    %50 = arith.addf %46, %49 : vector<40x128xf32>
    %c2 = arith.constant 2 : index
    %c0_19 = arith.constant 0 : index
    %c0_20 = arith.constant 0 : index
    %51 = vector.load %arg3[%c2, %c0_19, %c0_20] : memref<3x40x4xf32, #tpu.memory_space<vmem>>, vector<1x40x4xf32>
    %52 = vector.shape_cast %51 : vector<1x40x4xf32> to vector<40x4xf32>
    %cst_21 = arith.constant dense<0.000000e+00> : vector<40x128xf32>
    %53 = tpu.matmul %52, %43, %cst_21 {dimension_numbers = #tpu.dot_dimension_numbers<[1], [0], [0], [1], [0, 0, 1, 1], [], []>} : vector<40x4xf32>, vector<4x128xf32>, vector<40x128xf32> -> vector<40x128xf32>
    %54 = arith.addf %50, %53 : vector<40x128xf32>
    %c0_22 = arith.constant 0 : index
    %c0_23 = arith.constant 0 : index
    %55 = vector.load %arg4[%c0_22, %c0_23] : memref<40x1xf32, #tpu.memory_space<vmem>>, vector<40x1xf32>
    %56 = vector.broadcast %55 : vector<40x1xf32> to vector<40x128xf32>
    %57 = arith.addf %54, %56 : vector<40x128xf32>
    %cst_24 = arith.constant 0.000000e+00 : f32
    %58 = vector.broadcast %cst_24 : f32 to vector<40x128xf32>
    %59 = arith.maximumf %57, %58 : vector<40x128xf32>
    %c127_i32_25 = arith.constant 127 : i32
    %60 = tpu.dynamic_rotate %59 by %c127_i32_25 dim 1 : vector<40x128xf32>, i32 -> vector<40x128xf32>
    %61 = vector.broadcast %20 : vector<1x128xf32> to vector<40x128xf32>
    %62 = arith.mulf %60, %61 : vector<40x128xf32>
    %c1_i32_26 = arith.constant 1 : i32
    %63 = tpu.dynamic_rotate %59 by %c1_i32_26 dim 1 : vector<40x128xf32>, i32 -> vector<40x128xf32>
    %64 = vector.broadcast %24 : vector<1x128xf32> to vector<40x128xf32>
    %65 = arith.mulf %63, %64 : vector<40x128xf32>
    %c1_27 = arith.constant 1 : index
    %c0_28 = arith.constant 0 : index
    %c0_29 = arith.constant 0 : index
    %66 = vector.load %arg5[%c1_27, %c0_28, %c0_29] : memref<3x40x40xf32, #tpu.memory_space<vmem>>, vector<1x40x40xf32>
    %67 = vector.shape_cast %66 : vector<1x40x40xf32> to vector<40x40xf32>
    %cst_30 = arith.constant dense<0.000000e+00> : vector<40x128xf32>
    %68 = tpu.matmul %67, %59, %cst_30 {dimension_numbers = #tpu.dot_dimension_numbers<[1], [0], [0], [1], [0, 0, 1, 1], [], []>} : vector<40x40xf32>, vector<40x128xf32>, vector<40x128xf32> -> vector<40x128xf32>
    %c0_31 = arith.constant 0 : index
    %c0_32 = arith.constant 0 : index
    %c0_33 = arith.constant 0 : index
    %69 = vector.load %arg5[%c0_31, %c0_32, %c0_33] : memref<3x40x40xf32, #tpu.memory_space<vmem>>, vector<1x40x40xf32>
    %70 = vector.shape_cast %69 : vector<1x40x40xf32> to vector<40x40xf32>
    %cst_34 = arith.constant dense<0.000000e+00> : vector<40x128xf32>
    %71 = tpu.matmul %70, %62, %cst_34 {dimension_numbers = #tpu.dot_dimension_numbers<[1], [0], [0], [1], [0, 0, 1, 1], [], []>} : vector<40x40xf32>, vector<40x128xf32>, vector<40x128xf32> -> vector<40x128xf32>
    %72 = arith.addf %68, %71 : vector<40x128xf32>
    %c2_35 = arith.constant 2 : index
    %c0_36 = arith.constant 0 : index
    %c0_37 = arith.constant 0 : index
    %73 = vector.load %arg5[%c2_35, %c0_36, %c0_37] : memref<3x40x40xf32, #tpu.memory_space<vmem>>, vector<1x40x40xf32>
    %74 = vector.shape_cast %73 : vector<1x40x40xf32> to vector<40x40xf32>
    %cst_38 = arith.constant dense<0.000000e+00> : vector<40x128xf32>
    %75 = tpu.matmul %74, %65, %cst_38 {dimension_numbers = #tpu.dot_dimension_numbers<[1], [0], [0], [1], [0, 0, 1, 1], [], []>} : vector<40x40xf32>, vector<40x128xf32>, vector<40x128xf32> -> vector<40x128xf32>
    %76 = arith.addf %72, %75 : vector<40x128xf32>
    %c0_39 = arith.constant 0 : index
    %c0_40 = arith.constant 0 : index
    %77 = vector.load %arg6[%c0_39, %c0_40] : memref<40x1xf32, #tpu.memory_space<vmem>>, vector<40x1xf32>
    %78 = vector.broadcast %77 : vector<40x1xf32> to vector<40x128xf32>
    %79 = arith.addf %76, %78 : vector<40x128xf32>
    %cst_41 = arith.constant 0.000000e+00 : f32
    %80 = vector.broadcast %cst_41 : f32 to vector<40x128xf32>
    %81 = arith.maximumf %79, %80 : vector<40x128xf32>
    %c127_i32_42 = arith.constant 127 : i32
    %82 = tpu.dynamic_rotate %81 by %c127_i32_42 dim 1 : vector<40x128xf32>, i32 -> vector<40x128xf32>
    %83 = vector.broadcast %20 : vector<1x128xf32> to vector<40x128xf32>
    %84 = arith.mulf %82, %83 : vector<40x128xf32>
    %c1_i32_43 = arith.constant 1 : i32
    %85 = tpu.dynamic_rotate %81 by %c1_i32_43 dim 1 : vector<40x128xf32>, i32 -> vector<40x128xf32>
    %86 = vector.broadcast %24 : vector<1x128xf32> to vector<40x128xf32>
    %87 = arith.mulf %85, %86 : vector<40x128xf32>
    %c1_44 = arith.constant 1 : index
    %c0_45 = arith.constant 0 : index
    %c0_46 = arith.constant 0 : index
    %88 = vector.load %arg7[%c1_44, %c0_45, %c0_46] : memref<3x40x40xf32, #tpu.memory_space<vmem>>, vector<1x40x40xf32>
    %89 = vector.shape_cast %88 : vector<1x40x40xf32> to vector<40x40xf32>
    %cst_47 = arith.constant dense<0.000000e+00> : vector<40x128xf32>
    %90 = tpu.matmul %89, %81, %cst_47 {dimension_numbers = #tpu.dot_dimension_numbers<[1], [0], [0], [1], [0, 0, 1, 1], [], []>} : vector<40x40xf32>, vector<40x128xf32>, vector<40x128xf32> -> vector<40x128xf32>
    %c0_48 = arith.constant 0 : index
    %c0_49 = arith.constant 0 : index
    %c0_50 = arith.constant 0 : index
    %91 = vector.load %arg7[%c0_48, %c0_49, %c0_50] : memref<3x40x40xf32, #tpu.memory_space<vmem>>, vector<1x40x40xf32>
    %92 = vector.shape_cast %91 : vector<1x40x40xf32> to vector<40x40xf32>
    %cst_51 = arith.constant dense<0.000000e+00> : vector<40x128xf32>
    %93 = tpu.matmul %92, %84, %cst_51 {dimension_numbers = #tpu.dot_dimension_numbers<[1], [0], [0], [1], [0, 0, 1, 1], [], []>} : vector<40x40xf32>, vector<40x128xf32>, vector<40x128xf32> -> vector<40x128xf32>
    %94 = arith.addf %90, %93 : vector<40x128xf32>
    %c2_52 = arith.constant 2 : index
    %c0_53 = arith.constant 0 : index
    %c0_54 = arith.constant 0 : index
    %95 = vector.load %arg7[%c2_52, %c0_53, %c0_54] : memref<3x40x40xf32, #tpu.memory_space<vmem>>, vector<1x40x40xf32>
    %96 = vector.shape_cast %95 : vector<1x40x40xf32> to vector<40x40xf32>
    %cst_55 = arith.constant dense<0.000000e+00> : vector<40x128xf32>
    %97 = tpu.matmul %96, %87, %cst_55 {dimension_numbers = #tpu.dot_dimension_numbers<[1], [0], [0], [1], [0, 0, 1, 1], [], []>} : vector<40x40xf32>, vector<40x128xf32>, vector<40x128xf32> -> vector<40x128xf32>
    %98 = arith.addf %94, %97 : vector<40x128xf32>
    %c0_56 = arith.constant 0 : index
    %c0_57 = arith.constant 0 : index
    %99 = vector.load %arg8[%c0_56, %c0_57] : memref<40x1xf32, #tpu.memory_space<vmem>>, vector<40x1xf32>
    %100 = vector.broadcast %99 : vector<40x1xf32> to vector<40x128xf32>
    %101 = arith.addf %98, %100 : vector<40x128xf32>
    %cst_58 = arith.constant 0.000000e+00 : f32
    %102 = vector.broadcast %cst_58 : f32 to vector<40x128xf32>
    %103 = arith.maximumf %101, %102 : vector<40x128xf32>
    %c127_i32_59 = arith.constant 127 : i32
    %104 = tpu.dynamic_rotate %103 by %c127_i32_59 dim 1 : vector<40x128xf32>, i32 -> vector<40x128xf32>
    %105 = vector.broadcast %20 : vector<1x128xf32> to vector<40x128xf32>
    %106 = arith.mulf %104, %105 : vector<40x128xf32>
    %c1_i32_60 = arith.constant 1 : i32
    %107 = tpu.dynamic_rotate %103 by %c1_i32_60 dim 1 : vector<40x128xf32>, i32 -> vector<40x128xf32>
    %108 = vector.broadcast %24 : vector<1x128xf32> to vector<40x128xf32>
    %109 = arith.mulf %107, %108 : vector<40x128xf32>
    %c1_61 = arith.constant 1 : index
    %c0_62 = arith.constant 0 : index
    %c0_63 = arith.constant 0 : index
    %110 = vector.load %arg9[%c1_61, %c0_62, %c0_63] : memref<3x8x40xf32, #tpu.memory_space<vmem>>, vector<1x8x40xf32>
    %111 = vector.shape_cast %110 : vector<1x8x40xf32> to vector<8x40xf32>
    %cst_64 = arith.constant dense<0.000000e+00> : vector<8x128xf32>
    %112 = tpu.matmul %111, %103, %cst_64 {dimension_numbers = #tpu.dot_dimension_numbers<[1], [0], [0], [1], [0, 0, 1, 1], [], []>} : vector<8x40xf32>, vector<40x128xf32>, vector<8x128xf32> -> vector<8x128xf32>
    %c0_65 = arith.constant 0 : index
    %c0_66 = arith.constant 0 : index
    %c0_67 = arith.constant 0 : index
    %113 = vector.load %arg9[%c0_65, %c0_66, %c0_67] : memref<3x8x40xf32, #tpu.memory_space<vmem>>, vector<1x8x40xf32>
    %114 = vector.shape_cast %113 : vector<1x8x40xf32> to vector<8x40xf32>
    %cst_68 = arith.constant dense<0.000000e+00> : vector<8x128xf32>
    %115 = tpu.matmul %114, %106, %cst_68 {dimension_numbers = #tpu.dot_dimension_numbers<[1], [0], [0], [1], [0, 0, 1, 1], [], []>} : vector<8x40xf32>, vector<40x128xf32>, vector<8x128xf32> -> vector<8x128xf32>
    %116 = arith.addf %112, %115 : vector<8x128xf32>
    %c2_69 = arith.constant 2 : index
    %c0_70 = arith.constant 0 : index
    %c0_71 = arith.constant 0 : index
    %117 = vector.load %arg9[%c2_69, %c0_70, %c0_71] : memref<3x8x40xf32, #tpu.memory_space<vmem>>, vector<1x8x40xf32>
    %118 = vector.shape_cast %117 : vector<1x8x40xf32> to vector<8x40xf32>
    %cst_72 = arith.constant dense<0.000000e+00> : vector<8x128xf32>
    %119 = tpu.matmul %118, %109, %cst_72 {dimension_numbers = #tpu.dot_dimension_numbers<[1], [0], [0], [1], [0, 0, 1, 1], [], []>} : vector<8x40xf32>, vector<40x128xf32>, vector<8x128xf32> -> vector<8x128xf32>
    %120 = arith.addf %116, %119 : vector<8x128xf32>
    %c0_73 = arith.constant 0 : index
    %c0_74 = arith.constant 0 : index
    %121 = vector.load %arg10[%c0_73, %c0_74] : memref<8x1xf32, #tpu.memory_space<vmem>>, vector<8x1xf32>
    %122 = vector.broadcast %121 : vector<8x1xf32> to vector<8x128xf32>
    %123 = arith.addf %120, %122 : vector<8x128xf32>
    %cst_75 = arith.constant 0.000000e+00 : f32
    %124 = vector.broadcast %cst_75 : f32 to vector<8x128xf32>
    %125 = arith.maximumf %123, %124 : vector<8x128xf32>
    %c0_76 = arith.constant 0 : index
    %c0_77 = arith.constant 0 : index
    %126 = vector.load %arg11[%c0_76, %c0_77] : memref<8x128xf32, #tpu.memory_space<vmem>>, vector<8x128xf32>
    tpu.vector_store %arg11[%c0_76, %c0_77], %125 {strides = array<i32>} : memref<8x128xf32, #tpu.memory_space<vmem>>, vector<8x128xf32>,
    return
  }
}

</mosaic_0001>

<llo_original>
// kernel: tpu_custom_call.1
$region0: #{tpu_custom_call.1}
  #allocation0 [shape = 'u32[]', space=smem, size = 0x4, offset = 0x4, fixed_abs, tag = 'smem constant byte address 0x4 - core index']
  #allocation1 [shape = 'u32[144,128]{1,0:T(1,128)}', space=vmem, size = 0x12000, scoped, tag = 'internal scratch']
  %s0 = inlined_call_operand.vmem [shape: f32[2,32], index: 0, kind: input, shape index: {}]
  %s1 = inlined_call_operand.hbm [shape: f32[32,64], index: 1, kind: input, shape index: {}]
  %s2 = inlined_call_operand.vmem [shape: f32[1,64], index: 2, kind: input, shape index: {}]
  %s3 = inlined_call_operand.vmem [shape: f32[3,40,4], index: 3, kind: input, shape index: {}]
  %s4 = inlined_call_operand.vmem [shape: f32[40,1], index: 4, kind: input, shape index: {}]
  %s5 = inlined_call_operand.vmem [shape: f32[3,40,40], index: 5, kind: input, shape index: {}]
  %s6 = inlined_call_operand.vmem [shape: f32[40,1], index: 6, kind: input, shape index: {}]
  %s7 = inlined_call_operand.vmem [shape: f32[3,40,40], index: 7, kind: input, shape index: {}]
  %s8 = inlined_call_operand.vmem [shape: f32[40,1], index: 8, kind: input, shape index: {}]
  %s9 = inlined_call_operand.vmem [shape: f32[3,8,40], index: 9, kind: input, shape index: {}]
  %s10 = inlined_call_operand.vmem [shape: f32[8,1], index: 10, kind: input, shape index: {}]
  %s11 = inlined_call_operand.hbm [shape: f32[8,128], index: 11, kind: output, shape index: {}]
  %s12 = sld [smem:[#allocation0]]
  $region58: #{tpu_custom_call.1} parent=0
    _
  %s14 = ssub.s32 1, %s12
  %s15 = scalar_select 0, %s14, %s12
  $region1: #{tpu_custom_call.1} parent=0
    #allocation2 [shape = 'u8[16384]{0}', space=vmem, size = 0x4000, scoped, tag = 'input window, operand 1, single buffered']
    #allocation3 [shape = 's32[1]{0}', space=sflag, size = 0x4, scoped, tag = 'scoped memory for tpu_custom_call.1']
    #allocation4 [shape = 's32[1]{0}', space=sflag, size = 0x4, scoped, tag = 'scoped memory for tpu_custom_call.1']
    #allocation5 [shape = 'u8[4096]{0}', space=vmem, size = 0x1000, scoped, tag = 'output window, operand 0, single buffered']
    %16 = vsyncpa [#allocation3], 0
    %17 = vsyncpa [#allocation4], 0
    // Predicated region
    $region2: #{tpu_custom_call.1} parent=1 // pred_check
      _
    $region3: #{tpu_custom_call.1} parent=1 // pred_check_branch
      %19 = sbr.rel (0) target = $region5
    $region4: #{tpu_custom_call.1} parent=1 // pred_region
      _
    $region5: #{tpu_custom_call.1} parent=1 // pred_fallthru
      _
    // Predicated region
    $region6: #{tpu_custom_call.1} parent=1 // pred_check
      _
    $region7: #{tpu_custom_call.1} parent=1 // pred_check_branch
      %21 = sbr.rel (0) target = $region9
    $region8: #{tpu_custom_call.1} parent=1 // pred_region
      %s23 = ssub.s32 512, 512
      %24 = vsyncadd [#allocation3], %s23
      %s25 = sshll.u32 [#allocation2], 4
      %s26 = int_to_ptr.vmem [resolvable:$true] %s25
      %31 = dma.hbm_to_vmem [thread:$0]  %s1, 512, %s26, [#allocation3], 128, 128, 8
    $region9: #{tpu_custom_call.1} parent=1 // pred_fallthru
      _
    // Predicated region
    $region10: #{tpu_custom_call.1} parent=1 // pred_check
      _
    $region11: #{tpu_custom_call.1} parent=1 // pred_check_branch
      %33 = sbr.rel (0) target = $region13
    $region12: #{tpu_custom_call.1} parent=1 // pred_region
      _
    $region13: #{tpu_custom_call.1} parent=1 // pred_fallthru
      _
    // Predicated region
    $region14: #{tpu_custom_call.1} parent=1 // pred_check
      _
    $region15: #{tpu_custom_call.1} parent=1 // pred_check_branch
      %35 = sbr.rel (0) target = $region17
    $region16: #{tpu_custom_call.1} parent=1 // pred_region
      _
    $region17: #{tpu_custom_call.1} parent=1 // pred_fallthru
      _
    // Predicated region
    $region18: #{tpu_custom_call.1} parent=1 // pred_check
      _
    $region19: #{tpu_custom_call.1} parent=1 // pred_check_branch
      %37 = sbr.rel (0) target = $region21
    $region20: #{tpu_custom_call.1} parent=1 // pred_region
      _
    $region21: #{tpu_custom_call.1} parent=1 // pred_fallthru
      _
    // Predicated region
    $region22: #{tpu_custom_call.1} parent=1 // pred_check
      _
    $region23: #{tpu_custom_call.1} parent=1 // pred_check_branch
      %39 = sbr.rel (0) target = $region25
    $region24: #{tpu_custom_call.1} parent=1 // pred_region
      _
    $region25: #{tpu_custom_call.1} parent=1 // pred_fallthru
      _
    // Predicated region
    $region26: #{tpu_custom_call.1} parent=1 // pred_check
      _
    $region27: #{tpu_custom_call.1} parent=1 // pred_check_branch
      %41 = sbr.rel (0) target = $region29
    $region28: #{tpu_custom_call.1} parent=1 // pred_region
      _
    $region29: #{tpu_custom_call.1} parent=1 // pred_fallthru
      _
    // Predicated region
    $region30: #{tpu_custom_call.1} parent=1 // pred_check
      _
    $region31: #{tpu_custom_call.1} parent=1 // pred_check_branch
      %43 = sbr.rel (0) target = $region33
    $region32: #{tpu_custom_call.1} parent=1 // pred_region
      _
    $region33: #{tpu_custom_call.1} parent=1 // pred_fallthru
      _
    // Predicated region
    $region34: #{tpu_custom_call.1} parent=1 // pred_check
      _
    $region35: #{tpu_custom_call.1} parent=1 // pred_check_branch
      %45 = sbr.rel (0) target = $region37
    $region36: #{tpu_custom_call.1} parent=1 // pred_region
      _
    $region37: #{tpu_custom_call.1} parent=1 // pred_fallthru
      _
    // Predicated region
    $region38: #{tpu_custom_call.1} parent=1 // pred_check
      _
    $region39: #{tpu_custom_call.1} parent=1 // pred_check_branch
      %47 = sbr.rel (0) target = $region41
    $region40: #{tpu_custom_call.1} parent=1 // pred_region
      _
    $region41: #{tpu_custom_call.1} parent=1 // pred_fallthru
      _
    // Predicated region
    $region42: #{tpu_custom_call.1} parent=1 // pred_check
      _
    $region43: #{tpu_custom_call.1} parent=1 // pred_check_branch
      %49 = sbr.rel (0) target = $region45
    $region44: #{tpu_custom_call.1} parent=1 // pred_region
      _
    $region45: #{tpu_custom_call.1} parent=1 // pred_fallthru
      _
    // Predicated region
    $region46: #{tpu_custom_call.1} parent=1 // pred_check
      _
    $region47: #{tpu_custom_call.1} parent=1 // pred_check_branch
      %51 = sbr.rel (0) target = $region49
    $region48: #{tpu_custom_call.1} parent=1 // pred_region
      %52 = dma.done [#allocation3], 512
    $region49: #{tpu_custom_call.1} parent=1 // pred_fallthru
      _
    %v53 = vlaneseq
    %v54 = vand.u32 %v53, 127
    %vm55 = vcmp.lt.s32.totalorder %v54, 0
    %v56 = vsub.s32 0, %v54
    %v57 = vsel %vm55, %v56, %v54
    %v58 = vshrl.u32 %v57, 4
    %v59 = vand.u32 %v57, 15
    %v60 = vsub.s32 0, %v59
    %v61 = vsel %vm55, %v60, %v59
    %vm62 = vcmp.ne.s32.totalorder %v61, 0
    %vm63 = vcmp.lt.s32.totalorder %v61, 0
    %vm64 = vmand %vm63, %vm62
    %v65 = vadd.s32 %v61, 16
    %v66 = vsel %vm64, %v65, %v61
    %vm67 = vcmp.ne.s32.totalorder %v66, 15
    %v68 = vsel %vm67, 1, 0
    %v69 = vcvt.s32.f32 %v68
    %vm70 = vcmp.ne.s32.totalorder %v66, 0
    %v71 = vsel %vm70, 1, 0
    %v72 = vcvt.s32.f32 %v71
    %v73 = vld [vmem:[%s0] sm:$0x3]
    %v74 = vld [vmem:[#allocation2] sm:$0xff]
    %v75 = vld [vmem:[#allocation2 + $0x8] sm:$0xff]
    %v76 = vld [vmem:[#allocation2 + $0x10] sm:$0xff]
    %v77 = vld [vmem:[#allocation2 + $0x18] sm:$0xff]
    %v78 = vld [vmem:[%s2] sm:$0x1]
    %v80 = vlaneseq
    %v81 = vshrl.u32 %v80, 7
    %v82 = vsub.s32 0, %v81
    %v83 = vrot.slane %v78, %v82
    %vm85 = vcmask 261120
    %v87 = vsel %vm85, %v73, 0
    %89 = vmatprep.subr.mxu0 0.0
    %90 = vmatpush1.msra.mxu0 %v74
    %91 = vmatprep.subr.mxu0 0.0
    %92 = vmatpush1.msra.mxu0 %v75
    %93 = vmatprep.subr.mxu0 0.0
    %94 = vmatpush1.msra.mxu0 %v76
    %95 = vmatprep.subr.mxu0 0.0
    %96 = vmatpush1.msra.mxu0 %v77
    %97 = vmatprep.subr.mxu0 0.0
    %98 = vmatpush1.msra.mxu0 0.0
    %99 = vmatprep.subr.mxu0 0.0
    %100 = vmatpush1.msra.mxu0 0.0
    %101 = vmatprep.subr.mxu0 0.0
    %102 = vmatpush1.msra.mxu0 0.0
    %103 = vmatprep.subr.mxu0 0.0
    %104 = vmatpush1.msra.mxu0 0.0
    %105 = vmatprep.subr.mxu0 0.0
    %106 = vmatpush1.msra.mxu0 0.0
    %107 = vmatprep.subr.mxu0 0.0
    %108 = vmatpush1.msra.mxu0 0.0
    %109 = vmatprep.subr.mxu0 0.0
    %110 = vmatpush1.msra.mxu0 0.0
    %111 = vmatprep.subr.mxu0 0.0
    %112 = vmatpush1.msra.mxu0 0.0
    %113 = vmatprep.subr.mxu0 0.0
    %114 = vmatpush1.msra.mxu0 0.0
    %115 = vmatprep.subr.mxu0 0.0
    %116 = vmatpush1.msra.mxu0 0.0
    %117 = vmatprep.subr.mxu0 0.0
    %118 = vmatpush1.msra.mxu0 0.0
    %119 = vmatprep.subr.mxu0 0.0
    %120 = vmatpush1.msra.mxu0 0.0
    %121 = vmatprep.subr.mxu0 0.0
    %122 = vmatpush1.msra.mxu0 0.0
    %123 = vmatprep.subr.mxu0 0.0
    %124 = vmatpush1.msra.mxu0 0.0
    %125 = vmatprep.subr.mxu0 0.0
    %126 = vmatpush1.msra.mxu0 0.0
    %127 = vmatprep.subr.mxu0 0.0
    %128 = vmatpush1.msra.mxu0 0.0
    %129 = vmatprep.subr.mxu0 0.0
    %130 = vmatpush1.msra.mxu0 0.0
    %131 = vmatprep.subr.mxu0 0.0
    %132 = vmatpush1.msra.mxu0 0.0
    %133 = vmatprep.subr.mxu0 0.0
    %134 = vmatpush1.msra.mxu0 0.0
    %135 = vmatprep.subr.mxu0 0.0
    %136 = vmatpush1.msra.mxu0 0.0
    %137 = vmatprep.subr.mxu0 0.0
    %138 = vmatpush1.msra.mxu0 0.0
    %139 = vmatprep.subr.mxu0 0.0
    %140 = vmatpush1.msra.mxu0 0.0
    %141 = vmatprep.subr.mxu0 0.0
    %142 = vmatpush1.msra.mxu0 0.0
    %143 = vmatprep.subr.mxu0 0.0
    %144 = vmatpush1.msra.mxu0 0.0
    %145 = vmatprep.subr.mxu0 0.0
    %146 = vmatpush1.msra.mxu0 0.0
    %147 = vmatprep.subr.mxu0 0.0
    %148 = vmatpush1.msra.mxu0 0.0
    %149 = vmatprep.subr.mxu0 0.0
    %150 = vmatpush1.msra.mxu0 0.0
    %151 = vmatprep.subr.mxu0 0.0
    %152 = vmatpush1.msra.mxu0 0.0
    %153 = vmatprep.mubr.f32.mxu0 0.0
    %154 = vmatmul.mubr.f32.gmra.mrb[0].mxu0 %v87
    %v155 = vpop.f32.mrb[0].mxu0
    %v156 = vadd.f32 %v83, %v155
    %v157 = vpop.f32.mrb[0].mxu0
    %158 = vdwg.mxu0
    %v159 = vmax.f32 %v156, 0.0
    %161 = vrot.lane.b32.xlu0 %v159, 112
    %v162 = vpop.permute.xlu0 %161
    %164 = vrot.lane.b32.xlu0 %v159, 96
    %v165 = vpop.permute.xlu0 %164
    %167 = vrot.lane.b32.xlu0 %v159, 80
    %v168 = vpop.permute.xlu0 %167
    %v170 = vcombine.low %v159, %v165
    %v172 = vunpack.c.l.s4 1983009808
    %v173 = vunpack.c.0.s8 %v172
    %v174 = vlaneseq
    %v175 = vshrl.u32 %v174, 7
    %v176 = vsub.s32 %v173, %v175
    %v177 = vrot.slane %v170, %v176
    %v178 = vcombine.low %v162, %v168
    %v180 = vunpack.c.l.s4 1983009808
    %v181 = vunpack.c.0.s8 %v180
    %v182 = vlaneseq
    %v183 = vshrl.u32 %v182, 7
    %v184 = vsub.s32 %v181, %v183
    %v185 = vrot.slane %v178, %v184
    %v186 = vcombine.low %v177, %v185
    %v188 = vunpack.c.l.s4 1934713408
    %v189 = vunpack.c.0.s8 %v188
    %v190 = vlaneseq
    %v191 = vshrl.u32 %v190, 7
    %v192 = vsub.s32 %v189, %v191
    %v193 = vrot.slane %v186, %v192
    %v195 = vunpack.c.l.s4 1983009808
    %v196 = vunpack.c.0.s8 %v195
    %v197 = vlaneseq
    %v198 = vshrl.u32 %v197, 7
    %v199 = vsub.s32 %v196, %v198
    %v200 = vrot.slane %v193, %v199
    %v201 = vcombine.high %v193, 0.0
    %v203 = vunpack.c.l.s4 1983009808
    %v204 = vunpack.c.0.s8 %v203
    %v205 = vlaneseq
    %v206 = vshrl.u32 %v205, 7
    %v207 = vsub.s32 %v204, %v206
    %v208 = vrot.slane %v201, %v207
    %v209 = vcombine.low %v200, %v208
    %v210 = vcombine.high %v200, %v208
    %v212 = vunpack.c.l.s4 1934713408
    %v213 = vunpack.c.0.s8 %v212
    %v214 = vlaneseq
    %v215 = vshrl.u32 %v214, 7
    %v216 = vsub.s32 %v213, %v215
    %v217 = vrot.slane %v209, %v216
    %v219 = vunpack.c.l.s4 1934713408
    %v220 = vunpack.c.0.s8 %v219
    %v221 = vlaneseq
    %v222 = vshrl.u32 %v221, 7
    %v223 = vsub.s32 %v220, %v222
    %v224 = vrot.slane %v210, %v223
    %v225 = vcombine.high %v217, 0.0
    %v226 = vcombine.high %v224, 0.0
    %v227 = vcombine.low %v217, %v224
    %v229 = vunpack.c.l.s4 1983009808
    %v230 = vunpack.c.0.s8 %v229
    %v231 = vlaneseq
    %v232 = vshrl.u32 %v231, 7
    %v233 = vsub.s32 %v230, %v232
    %v234 = vrot.slane %v227, %v233
    %v235 = vcombine.low %v225, %v226
    %v237 = vunpack.c.l.s4 1983009808
    %v238 = vunpack.c.0.s8 %v237
    %v239 = vlaneseq
    %v240 = vshrl.u32 %v239, 7
    %v241 = vsub.s32 %v238, %v240
    %v242 = vrot.slane %v235, %v241
    %v243 = vcombine.low %v234, %v242
    %v245 = vunpack.c.l.s4 1934713408
    %v246 = vunpack.c.0.s8 %v245
    %v247 = vlaneseq
    %v248 = vshrl.u32 %v247, 7
    %v249 = vsub.s32 %v246, %v248
    %v250 = vrot.slane %v243, %v249
    %v251 = vcombine.high %v250, 0.0
    %253 = vrot.lane.b32.xlu0 %v251, 16
    %v254 = vpop.permute.xlu0 %253
    %vm256 = vcmask 130048
    %v257 = vsel %vm256, %v250, %v254
    %v258 = vsel %vm85, %v257, 0.0
    %259 = vrot.lane.b32.xlu0 %v258, 127
    %v260 = vpop.permute.xlu0 %259
    %v261 = vmul.f32 %v260, %v69
    %262 = vrot.lane.b32.xlu0 %v258, 1
    %v263 = vpop.permute.xlu0 %262
    %v264 = vmul.f32 %v263, %v72
    %s265 = scalar_lea.vmem %s3, 40
    %v266 = vld [vmem:[%s265] sm:$0xff]
    %v267 = vld [vmem:[%s265 + $0x8] sm:$0xff]
    %v268 = vld [vmem:[%s265 + $0x10] sm:$0xff]
    %v269 = vld [vmem:[%s265 + $0x18] sm:$0xff]
    %v270 = vld [vmem:[%s265 + $0x20] sm:$0xff]
    %v271 = vld [vmem:[%s3] sm:$0xff]
    %v272 = vld [vmem:[%s3 + $0x8] sm:$0xff]
    %v273 = vld [vmem:[%s3 + $0x10] sm:$0xff]
    %v274 = vld [vmem:[%s3 + $0x18] sm:$0xff]
    %v275 = vld [vmem:[%s3 + $0x20] sm:$0xff]
    %vm276 = vcmask 31744
    %v278 = vsel %vm276, %v271, 0
    %v281 = vsel %vm276, %v272, 0
    %v284 = vsel %vm276, %v273, 0
    %v287 = vsel %vm276, %v274, 0
    %v290 = vsel %vm276, %v275, 0
    %vm292 = vcmask 1043456
    %v294 = vsel %vm292, %v261, 0
    %296 = vmatprep.subr.mxu0 0.0
    %297 = vmatpush1.msra.mxu0 %v294
    %298 = vmatprep.subr.mxu0 0.0
    %299 = vmatpush1.msra.mxu0 0.0
    %300 = vmatprep.subr.mxu0 0.0
    %301 = vmatpush1.msra.mxu0 0.0
    %302 = vmatprep.subr.mxu0 0.0
    %303 = vmatpush1.msra.mxu0 0.0
    %304 = vmatprep.subr.mxu0 0.0
    %305 = vmatpush1.msra.mxu0 0.0
    %306 = vmatprep.subr.mxu0 0.0
    %307 = vmatpush1.msra.mxu0 0.0
    %308 = vmatprep.subr.mxu0 0.0
    %309 = vmatpush1.msra.mxu0 0.0
    %310 = vmatprep.subr.mxu0 0.0
    %311 = vmatpush1.msra.mxu0 0.0
    %312 = vmatprep.subr.mxu0 0.0
    %313 = vmatpush1.msra.mxu0 0.0
    %314 = vmatprep.subr.mxu0 0.0
    %315 = vmatpush1.msra.mxu0 0.0
    %316 = vmatprep.subr.mxu0 0.0
    %317 = vmatpush1.msra.mxu0 0.0
    %318 = vmatprep.subr.mxu0 0.0
    %319 = vmatpush1.msra.mxu0 0.0
    %320 = vmatprep.subr.mxu0 0.0
    %321 = vmatpush1.msra.mxu0 0.0
    %322 = vmatprep.subr.mxu0 0.0
    %323 = vmatpush1.msra.mxu0 0.0
    %324 = vmatprep.subr.mxu0 0.0
    %325 = vmatpush1.msra.mxu0 0.0
    %326 = vmatprep.subr.mxu0 0.0
    %327 = vmatpush1.msra.mxu0 0.0
    %328 = vmatprep.subr.mxu0 0.0
    %329 = vmatpush1.msra.mxu0 0.0
    %330 = vmatprep.subr.mxu0 0.0
    %331 = vmatpush1.msra.mxu0 0.0
    %332 = vmatprep.subr.mxu0 0.0
    %333 = vmatpush1.msra.mxu0 0.0
    %334 = vmatprep.subr.mxu0 0.0
    %335 = vmatpush1.msra.mxu0 0.0
    %336 = vmatprep.subr.mxu0 0.0
    %337 = vmatpush1.msra.mxu0 0.0
    %338 = vmatprep.subr.mxu0 0.0
    %339 = vmatpush1.msra.mxu0 0.0
    %340 = vmatprep.subr.mxu0 0.0
    %341 = vmatpush1.msra.mxu0 0.0
    %342 = vmatprep.subr.mxu0 0.0
    %343 = vmatpush1.msra.mxu0 0.0
    %344 = vmatprep.subr.mxu0 0.0
    %345 = vmatpush1.msra.mxu0 0.0
    %346 = vmatprep.subr.mxu0 0.0
    %347 = vmatpush1.msra.mxu0 0.0
    %348 = vmatprep.subr.mxu0 0.0
    %349 = vmatpush1.msra.mxu0 0.0
    %350 = vmatprep.subr.mxu0 0.0
    %351 = vmatpush1.msra.mxu0 0.0
    %352 = vmatprep.subr.mxu0 0.0
    %353 = vmatpush1.msra.mxu0 0.0
    %354 = vmatprep.subr.mxu0 0.0
    %355 = vmatpush1.msra.mxu0 0.0
    %356 = vmatprep.subr.mxu0 0.0
    %357 = vmatpush1.msra.mxu0 0.0
    %358 = vmatprep.subr.mxu0 0.0
    %359 = vmatpush1.msra.mxu0 0.0
    %360 = vmatprep.mubr.f32.mxu0 0.0
    %361 = vmatmul.mubr.f32.gmra.mrb[0].mxu0 %v278
    %v362 = vpop.f32.mrb[0].mxu0
    %v363 = vadd.f32 0.0, %v362
    %v364 = vpop.f32.mrb[0].mxu0
    %365 = vmatprep.mubr.f32.mxu0 0.0
    %366 = vmatmul.mubr.f32.gmra.mrb[0].mxu0 %v281
    %v367 = vpop.f32.mrb[0].mxu0
    %v368 = vadd.f32 0.0, %v367
    %v369 = vpop.f32.mrb[0].mxu0
    %370 = vmatprep.mubr.f32.mxu0 0.0
    %371 = vmatmul.mubr.f32.gmra.mrb[0].mxu0 %v284
    %v372 = vpop.f32.mrb[0].mxu0
    %v373 = vadd.f32 0.0, %v372
    %v374 = vpop.f32.mrb[0].mxu0
    %375 = vmatprep.mubr.f32.mxu0 0.0
    %376 = vmatmul.mubr.f32.gmra.mrb[0].mxu0 %v287
    %v377 = vpop.f32.mrb[0].mxu0
    %v378 = vadd.f32 0.0, %v377
    %v379 = vpop.f32.mrb[0].mxu0
    %380 = vmatprep.mubr.f32.mxu0 0.0
    %381 = vmatmul.mubr.f32.gmra.mrb[0].mxu0 %v290
    %v382 = vpop.f32.mrb[0].mxu0
    %v383 = vadd.f32 0.0, %v382
    %v384 = vpop.f32.mrb[0].mxu0
    %385 = vdwg.mxu0
    %v387 = vsel %vm276, %v266, 0
    %v390 = vsel %vm276, %v267, 0
    %v393 = vsel %vm276, %v268, 0
    %v396 = vsel %vm276, %v269, 0
    %v399 = vsel %vm276, %v270, 0
    %v402 = vsel %vm292, %v258, 0
    %404 = vmatprep.subr.mxu0 0.0
    %405 = vmatpush1.msra.mxu0 %v402
    %406 = vmatprep.subr.mxu0 0.0
    %407 = vmatpush1.msra.mxu0 0.0
    %408 = vmatprep.subr.mxu0 0.0
    %409 = vmatpush1.msra.mxu0 0.0
    %410 = vmatprep.subr.mxu0 0.0
    %411 = vmatpush1.msra.mxu0 0.0
    %412 = vmatprep.subr.mxu0 0.0
    %413 = vmatpush1.msra.mxu0 0.0
    %414 = vmatprep.subr.mxu0 0.0
    %415 = vmatpush1.msra.mxu0 0.0
    %416 = vmatprep.subr.mxu0 0.0
    %417 = vmatpush1.msra.mxu0 0.0
    %418 = vmatprep.subr.mxu0 0.0
    %419 = vmatpush1.msra.mxu0 0.0
    %420 = vmatprep.subr.mxu0 0.0
    %421 = vmatpush1.msra.mxu0 0.0
    %422 = vmatprep.subr.mxu0 0.0
    %423 = vmatpush1.msra.mxu0 0.0
    %424 = vmatprep.subr.mxu0 0.0
    %425 = vmatpush1.msra.mxu0 0.0
    %426 = vmatprep.subr.mxu0 0.0
    %427 = vmatpush1.msra.mxu0 0.0
    %428 = vmatprep.subr.mxu0 0.0
    %429 = vmatpush1.msra.mxu0 0.0
    %430 = vmatprep.subr.mxu0 0.0
    %431 = vmatpush1.msra.mxu0 0.0
    %432 = vmatprep.subr.mxu0 0.0
    %433 = vmatpush1.msra.mxu0 0.0
    %434 = vmatprep.subr.mxu0 0.0
    %435 = vmatpush1.msra.mxu0 0.0
    %436 = vmatprep.subr.mxu0 0.0
    %437 = vmatpush1.msra.mxu0 0.0
    %438 = vmatprep.subr.mxu0 0.0
    %439 = vmatpush1.msra.mxu0 0.0
    %440 = vmatprep.subr.mxu0 0.0
    %441 = vmatpush1.msra.mxu0 0.0
    %442 = vmatprep.subr.mxu0 0.0
    %443 = vmatpush1.msra.mxu0 0.0
    %444 = vmatprep.subr.mxu0 0.0
    %445 = vmatpush1.msra.mxu0 0.0
    %446 = vmatprep.subr.mxu0 0.0
    %447 = vmatpush1.msra.mxu0 0.0
    %448 = vmatprep.subr.mxu0 0.0
    %449 = vmatpush1.msra.mxu0 0.0
    %450 = vmatprep.subr.mxu0 0.0
    %451 = vmatpush1.msra.mxu0 0.0
    %452 = vmatprep.subr.mxu0 0.0
    %453 = vmatpush1.msra.mxu0 0.0
    %454 = vmatprep.subr.mxu0 0.0
    %455 = vmatpush1.msra.mxu0 0.0
    %456 = vmatprep.subr.mxu0 0.0
    %457 = vmatpush1.msra.mxu0 0.0
    %458 = vmatprep.subr.mxu0 0.0
    %459 = vmatpush1.msra.mxu0 0.0
    %460 = vmatprep.subr.mxu0 0.0
    %461 = vmatpush1.msra.mxu0 0.0
    %462 = vmatprep.subr.mxu0 0.0
    %463 = vmatpush1.msra.mxu0 0.0
    %464 = vmatprep.subr.mxu0 0.0
    %465 = vmatpush1.msra.mxu0 0.0
    %466 = vmatprep.subr.mxu0 0.0
    %467 = vmatpush1.msra.mxu0 0.0
    %468 = vmatprep.mubr.f32.mxu0 0.0
    %469 = vmatmul.mubr.f32.gmra.mrb[0].mxu0 %v387
    %v470 = vpop.f32.mrb[0].mxu0
    %v471 = vadd.f32 %v363, %v470
    %v472 = vpop.f32.mrb[0].mxu0
    %473 = vmatprep.mubr.f32.mxu0 0.0
    %474 = vmatmul.mubr.f32.gmra.mrb[0].mxu0 %v390
    %v475 = vpop.f32.mrb[0].mxu0
    %v476 = vadd.f32 %v368, %v475
    %v477 = vpop.f32.mrb[0].mxu0
    %478 = vmatprep.mubr.f32.mxu0 0.0
    %479 = vmatmul.mubr.f32.gmra.mrb[0].mxu0 %v393
    %v480 = vpop.f32.mrb[0].mxu0
    %v481 = vadd.f32 %v373, %v480
    %v482 = vpop.f32.mrb[0].mxu0
    %483 = vmatprep.mubr.f32.mxu0 0.0
    %484 = vmatmul.mubr.f32.gmra.mrb[0].mxu0 %v396
    %v485 = vpop.f32.mrb[0].mxu0
    %v486 = vadd.f32 %v378, %v485
    %v487 = vpop.f32.mrb[0].mxu0
    %488 = vmatprep.mubr.f32.mxu0 0.0
    %489 = vmatmul.mubr.f32.gmra.mrb[0].mxu0 %v399
    %v490 = vpop.f32.mrb[0].mxu0
    %v491 = vadd.f32 %v383, %v490
    %v492 = vpop.f32.mrb[0].mxu0
    %493 = vdwg.mxu0
    %s494 = scalar_lea.vmem %s3, 80
    %v495 = vld [vmem:[%s494] sm:$0xff]
    %v496 = vld [vmem:[%s494 + $0x8] sm:$0xff]
    %v497 = vld [vmem:[%s494 + $0x10] sm:$0xff]
    %v498 = vld [vmem:[%s494 + $0x18] sm:$0xff]
    %v499 = vld [vmem:[%s494 + $0x20] sm:$0xff]
    %v501 = vsel %vm276, %v495, 0
    %v504 = vsel %vm276, %v496, 0
    %v507 = vsel %vm276, %v497, 0
    %v510 = vsel %vm276, %v498, 0
    %v513 = vsel %vm276, %v499, 0
    %v516 = vsel %vm292, %v264, 0
    %518 = vmatprep.subr.mxu0 0.0
    %519 = vmatpush1.msra.mxu0 %v516
    %520 = vmatprep.subr.mxu0 0.0
    %521 = vmatpush1.msra.mxu0 0.0
    %522 = vmatprep.subr.mxu0 0.0
    %523 = vmatpush1.msra.mxu0 0.0
    %524 = vmatprep.subr.mxu0 0.0
    %525 = vmatpush1.msra.mxu0 0.0
    %526 = vmatprep.subr.mxu0 0.0
    %527 = vmatpush1.msra.mxu0 0.0
    %528 = vmatprep.subr.mxu0 0.0
    %529 = vmatpush1.msra.mxu0 0.0
    %530 = vmatprep.subr.mxu0 0.0
    %531 = vmatpush1.msra.mxu0 0.0
    %532 = vmatprep.subr.mxu0 0.0
    %533 = vmatpush1.msra.mxu0 0.0
    %534 = vmatprep.subr.mxu0 0.0
    %535 = vmatpush1.msra.mxu0 0.0
    %536 = vmatprep.subr.mxu0 0.0
    %537 = vmatpush1.msra.mxu0 0.0
    %538 = vmatprep.subr.mxu0 0.0
    %539 = vmatpush1.msra.mxu0 0.0
    %540 = vmatprep.subr.mxu0 0.0
    %541 = vmatpush1.msra.mxu0 0.0
    %542 = vmatprep.subr.mxu0 0.0
    %543 = vmatpush1.msra.mxu0 0.0
    %544 = vmatprep.subr.mxu0 0.0
    %545 = vmatpush1.msra.mxu0 0.0
    %546 = vmatprep.subr.mxu0 0.0
    %547 = vmatpush1.msra.mxu0 0.0
    %548 = vmatprep.subr.mxu0 0.0
    %549 = vmatpush1.msra.mxu0 0.0
    %550 = vmatprep.subr.mxu0 0.0
    %551 = vmatpush1.msra.mxu0 0.0
    %552 = vmatprep.subr.mxu0 0.0
    %553 = vmatpush1.msra.mxu0 0.0
    %554 = vmatprep.subr.mxu0 0.0
    %555 = vmatpush1.msra.mxu0 0.0
    %556 = vmatprep.subr.mxu0 0.0
    %557 = vmatpush1.msra.mxu0 0.0
    %558 = vmatprep.subr.mxu0 0.0
    %559 = vmatpush1.msra.mxu0 0.0
    %560 = vmatprep.subr.mxu0 0.0
    %561 = vmatpush1.msra.mxu0 0.0
    %562 = vmatprep.subr.mxu0 0.0
    %563 = vmatpush1.msra.mxu0 0.0
    %564 = vmatprep.subr.mxu0 0.0
    %565 = vmatpush1.msra.mxu0 0.0
    %566 = vmatprep.subr.mxu0 0.0
    %567 = vmatpush1.msra.mxu0 0.0
    %568 = vmatprep.subr.mxu0 0.0
    %569 = vmatpush1.msra.mxu0 0.0
    %570 = vmatprep.subr.mxu0 0.0
    %571 = vmatpush1.msra.mxu0 0.0
    %572 = vmatprep.subr.mxu0 0.0
    %573 = vmatpush1.msra.mxu0 0.0
    %574 = vmatprep.subr.mxu0 0.0
    %575 = vmatpush1.msra.mxu0 0.0
    %576 = vmatprep.subr.mxu0 0.0
    %577 = vmatpush1.msra.mxu0 0.0
    %578 = vmatprep.subr.mxu0 0.0
    %579 = vmatpush1.msra.mxu0 0.0
    %580 = vmatprep.subr.mxu0 0.0
    %581 = vmatpush1.msra.mxu0 0.0
    %582 = vmatprep.mubr.f32.mxu0 0.0
    %583 = vmatmul.mubr.f32.gmra.mrb[0].mxu0 %v501
    %v584 = vpop.f32.mrb[0].mxu0
    %v585 = vadd.f32 0.0, %v584
    %v586 = vpop.f32.mrb[0].mxu0
    %587 = vmatprep.mubr.f32.mxu0 0.0
    %588 = vmatmul.mubr.f32.gmra.mrb[0].mxu0 %v504
    %v589 = vpop.f32.mrb[0].mxu0
    %v590 = vadd.f32 0.0, %v589
    %v591 = vpop.f32.mrb[0].mxu0
    %592 = vmatprep.mubr.f32.mxu0 0.0
    %593 = vmatmul.mubr.f32.gmra.mrb[0].mxu0 %v507
    %v594 = vpop.f32.mrb[0].mxu0
    %v595 = vadd.f32 0.0, %v594
    %v596 = vpop.f32.mrb[0].mxu0
    %597 = vmatprep.mubr.f32.mxu0 0.0
    %598 = vmatmul.mubr.f32.gmra.mrb[0].mxu0 %v510
    %v599 = vpop.f32.mrb[0].mxu0
    %v600 = vadd.f32 0.0, %v599
    %v601 = vpop.f32.mrb[0].mxu0
    %602 = vmatprep.mubr.f32.mxu0 0.0
    %603 = vmatmul.mubr.f32.gmra.mrb[0].mxu0 %v513
    %v604 = vpop.f32.mrb[0].mxu0
    %v605 = vadd.f32 0.0, %v604
    %v606 = vpop.f32.mrb[0].mxu0
    %607 = vdwg.mxu0
    %v608 = vadd.f32 %v471, %v585
    %v609 = vadd.f32 %v476, %v590
    %v610 = vadd.f32 %v481, %v595
    %v611 = vadd.f32 %v486, %v600
    %v612 = vadd.f32 %v491, %v605
    %v613 = vld [vmem:[%s4] sm:$0xff]
    %v614 = vld [vmem:[%s4 + $0x8] sm:$0xff]
    %v615 = vld [vmem:[%s4 + $0x10] sm:$0xff]
    %v616 = vld [vmem:[%s4 + $0x18] sm:$0xff]
    %v617 = vld [vmem:[%s4 + $0x20] sm:$0xff]
    %619 = vset.pattern.permute.xlu0 0
    %620 = vperm.xlu0 %619, %v613
    %v621 = vpop.permute.xlu0 %620
    %624 = vset.pattern.permute.xlu0 0
    %625 = vperm.xlu0 %624, %v614
    %v626 = vpop.permute.xlu0 %625
    %629 = vset.pattern.permute.xlu0 0
    %630 = vperm.xlu0 %629, %v615
    %v631 = vpop.permute.xlu0 %630
    %634 = vset.pattern.permute.xlu0 0
    %635 = vperm.xlu0 %634, %v616
    %v636 = vpop.permute.xlu0 %635
    %639 = vset.pattern.permute.xlu0 0
    %640 = vperm.xlu0 %639, %v617
    %v641 = vpop.permute.xlu0 %640
    %v643 = vadd.f32 %v608, %v621
    %v644 = vadd.f32 %v609, %v626
    %v645 = vadd.f32 %v610, %v631
    %v646 = vadd.f32 %v611, %v636
    %v647 = vadd.f32 %v612, %v641
    %v648 = vmax.f32 %v643, 0.0
    %v649 = vmax.f32 %v644, 0.0
    %v650 = vmax.f32 %v645, 0.0
    %v651 = vmax.f32 %v646, 0.0
    %v652 = vmax.f32 %v647, 0.0
    %653 = vrot.lane.b32.xlu0 %v648, 127
    %v654 = vpop.permute.xlu0 %653
    %655 = vrot.lane.b32.xlu0 %v649, 127
    %v656 = vpop.permute.xlu0 %655
    %657 = vrot.lane.b32.xlu0 %v650, 127
    %v658 = vpop.permute.xlu0 %657
    %659 = vrot.lane.b32.xlu0 %v651, 127
    %v660 = vpop.permute.xlu0 %659
    %661 = vrot.lane.b32.xlu0 %v652, 127
    %v662 = vpop.permute.xlu0 %661
    %v663 = vmul.f32 %v654, %v69
    %v664 = vmul.f32 %v656, %v69
    %v665 = vmul.f32 %v658, %v69
    %v666 = vmul.f32 %v660, %v69
    %v667 = vmul.f32 %v662, %v69
    %668 = vrot.lane.b32.xlu0 %v648, 1
    %v669 = vpop.permute.xlu0 %668
    %670 = vrot.lane.b32.xlu0 %v649, 1
    %v671 = vpop.permute.xlu0 %670
    %672 = vrot.lane.b32.xlu0 %v650, 1
    %v673 = vpop.permute.xlu0 %672
    %674 = vrot.lane.b32.xlu0 %v651, 1
    %v675 = vpop.permute.xlu0 %674
    %676 = vrot.lane.b32.xlu0 %v652, 1
    %v677 = vpop.permute.xlu0 %676
    %v678 = vmul.f32 %v669, %v72
    %v679 = vmul.f32 %v671, %v72
    %v680 = vmul.f32 %v673, %v72
    %v681 = vmul.f32 %v675, %v72
    %v682 = vmul.f32 %v677, %v72
    %s683 = scalar_lea.vmem %s5, 40
    %v684 = vld [vmem:[%s683] sm:$0xff]
    %v685 = vld [vmem:[%s683 + $0x8] sm:$0xff]
    %v686 = vld [vmem:[%s683 + $0x10] sm:$0xff]
    %v687 = vld [vmem:[%s683 + $0x18] sm:$0xff]
    %v688 = vld [vmem:[%s683 + $0x20] sm:$0xff]
    %v689 = vld [vmem:[%s5] sm:$0xff]
    %v690 = vld [vmem:[%s5 + $0x8] sm:$0xff]
    %v691 = vld [vmem:[%s5 + $0x10] sm:$0xff]
    %v692 = vld [vmem:[%s5 + $0x18] sm:$0xff]
    %v693 = vld [vmem:[%s5 + $0x20] sm:$0xff]
    %vm694 = vcmask 326656
    %v696 = vsel %vm694, %v689, 0
    %v699 = vsel %vm694, %v690, 0
    %v702 = vsel %vm694, %v691, 0
    %v705 = vsel %vm694, %v692, 0
    %v708 = vsel %vm694, %v693, 0
    %710 = vmatprep.subr.mxu0 0.0
    %711 = vmatpush1.msra.mxu0 %v663
    %712 = vmatprep.subr.mxu0 0.0
    %713 = vmatpush1.msra.mxu0 %v664
    %714 = vmatprep.subr.mxu0 0.0
    %715 = vmatpush1.msra.mxu0 %v665
    %716 = vmatprep.subr.mxu0 0.0
    %717 = vmatpush1.msra.mxu0 %v666
    %718 = vmatprep.subr.mxu0 0.0
    %719 = vmatpush1.msra.mxu0 %v667
    %720 = vmatprep.subr.mxu0 0.0
    %721 = vmatpush1.msra.mxu0 0.0
    %722 = vmatprep.subr.mxu0 0.0
    %723 = vmatpush1.msra.mxu0 0.0
    %724 = vmatprep.subr.mxu0 0.0
    %725 = vmatpush1.msra.mxu0 0.0
    %726 = vmatprep.subr.mxu0 0.0
    %727 = vmatpush1.msra.mxu0 0.0
    %728 = vmatprep.subr.mxu0 0.0
    %729 = vmatpush1.msra.mxu0 0.0
    %730 = vmatprep.subr.mxu0 0.0
    %731 = vmatpush1.msra.mxu0 0.0
    %732 = vmatprep.subr.mxu0 0.0
    %733 = vmatpush1.msra.mxu0 0.0
    %734 = vmatprep.subr.mxu0 0.0
    %735 = vmatpush1.msra.mxu0 0.0
    %736 = vmatprep.subr.mxu0 0.0
    %737 = vmatpush1.msra.mxu0 0.0
    %738 = vmatprep.subr.mxu0 0.0
    %739 = vmatpush1.msra.mxu0 0.0
    %740 = vmatprep.subr.mxu0 0.0
    %741 = vmatpush1.msra.mxu0 0.0
    %742 = vmatprep.subr.mxu0 0.0
    %743 = vmatpush1.msra.mxu0 0.0
    %744 = vmatprep.subr.mxu0 0.0
    %745 = vmatpush1.msra.mxu0 0.0
    %746 = vmatprep.subr.mxu0 0.0
    %747 = vmatpush1.msra.mxu0 0.0
    %748 = vmatprep.subr.mxu0 0.0
    %749 = vmatpush1.msra.mxu0 0.0
    %750 = vmatprep.subr.mxu0 0.0
    %751 = vmatpush1.msra.mxu0 0.0
    %752 = vmatprep.subr.mxu0 0.0
    %753 = vmatpush1.msra.mxu0 0.0
    %754 = vmatprep.subr.mxu0 0.0
    %755 = vmatpush1.msra.mxu0 0.0
    %756 = vmatprep.subr.mxu0 0.0
    %757 = vmatpush1.msra.mxu0 0.0
    %758 = vmatprep.subr.mxu0 0.0
    %759 = vmatpush1.msra.mxu0 0.0
    %760 = vmatprep.subr.mxu0 0.0
    %761 = vmatpush1.msra.mxu0 0.0
    %762 = vmatprep.subr.mxu0 0.0
    %763 = vmatpush1.msra.mxu0 0.0
    %764 = vmatprep.subr.mxu0 0.0
    %765 = vmatpush1.msra.mxu0 0.0
    %766 = vmatprep.subr.mxu0 0.0
    %767 = vmatpush1.msra.mxu0 0.0
    %768 = vmatprep.subr.mxu0 0.0
    %769 = vmatpush1.msra.mxu0 0.0
    %770 = vmatprep.subr.mxu0 0.0
    %771 = vmatpush1.msra.mxu0 0.0
    %772 = vmatprep.subr.mxu0 0.0
    %773 = vmatpush1.msra.mxu0 0.0
    %774 = vmatprep.mubr.f32.mxu0 0.0
    %775 = vmatmul.mubr.f32.gmra.mrb[0].mxu0 %v696
    %v776 = vpop.f32.mrb[0].mxu0
    %v777 = vadd.f32 0.0, %v776
    %v778 = vpop.f32.mrb[0].mxu0
    %779 = vmatprep.mubr.f32.mxu0 0.0
    %780 = vmatmul.mubr.f32.gmra.mrb[0].mxu0 %v699
    %v781 = vpop.f32.mrb[0].mxu0
    %v782 = vadd.f32 0.0, %v781
    %v783 = vpop.f32.mrb[0].mxu0
    %784 = vmatprep.mubr.f32.mxu0 0.0
    %785 = vmatmul.mubr.f32.gmra.mrb[0].mxu0 %v702
    %v786 = vpop.f32.mrb[0].mxu0
    %v787 = vadd.f32 0.0, %v786
    %v788 = vpop.f32.mrb[0].mxu0
    %789 = vmatprep.mubr.f32.mxu0 0.0
    %790 = vmatmul.mubr.f32.gmra.mrb[0].mxu0 %v705
    %v791 = vpop.f32.mrb[0].mxu0
    %v792 = vadd.f32 0.0, %v791
    %v793 = vpop.f32.mrb[0].mxu0
    %794 = vmatprep.mubr.f32.mxu0 0.0
    %795 = vmatmul.mubr.f32.gmra.mrb[0].mxu0 %v708
    %v796 = vpop.f32.mrb[0].mxu0
    %v797 = vadd.f32 0.0, %v796
    %v798 = vpop.f32.mrb[0].mxu0
    %799 = vdwg.mxu0
    %v801 = vsel %vm694, %v684, 0
    %v804 = vsel %vm694, %v685, 0
    %v807 = vsel %vm694, %v686, 0
    %v810 = vsel %vm694, %v687, 0
    %v813 = vsel %vm694, %v688, 0
    %815 = vmatprep.subr.mxu0 0.0
    %816 = vmatpush1.msra.mxu0 %v648
    %817 = vmatprep.subr.mxu0 0.0
    %818 = vmatpush1.msra.mxu0 %v649
    %819 = vmatprep.subr.mxu0 0.0
    %820 = vmatpush1.msra.mxu0 %v650
    %821 = vmatprep.subr.mxu0 0.0
    %822 = vmatpush1.msra.mxu0 %v651
    %823 = vmatprep.subr.mxu0 0.0
    %824 = vmatpush1.msra.mxu0 %v652
    %825 = vmatprep.subr.mxu0 0.0
    %826 = vmatpush1.msra.mxu0 0.0
    %827 = vmatprep.subr.mxu0 0.0
    %828 = vmatpush1.msra.mxu0 0.0
    %829 = vmatprep.subr.mxu0 0.0
    %830 = vmatpush1.msra.mxu0 0.0
    %831 = vmatprep.subr.mxu0 0.0
    %832 = vmatpush1.msra.mxu0 0.0
    %833 = vmatprep.subr.mxu0 0.0
    %834 = vmatpush1.msra.mxu0 0.0
    %835 = vmatprep.subr.mxu0 0.0
    %836 = vmatpush1.msra.mxu0 0.0
    %837 = vmatprep.subr.mxu0 0.0
    %838 = vmatpush1.msra.mxu0 0.0
    %839 = vmatprep.subr.mxu0 0.0
    %840 = vmatpush1.msra.mxu0 0.0
    %841 = vmatprep.subr.mxu0 0.0
    %842 = vmatpush1.msra.mxu0 0.0
    %843 = vmatprep.subr.mxu0 0.0
    %844 = vmatpush1.msra.mxu0 0.0
    %845 = vmatprep.subr.mxu0 0.0
    %846 = vmatpush1.msra.mxu0 0.0
    %847 = vmatprep.subr.mxu0 0.0
    %848 = vmatpush1.msra.mxu0 0.0
    %849 = vmatprep.subr.mxu0 0.0
    %850 = vmatpush1.msra.mxu0 0.0
    %851 = vmatprep.subr.mxu0 0.0
    %852 = vmatpush1.msra.mxu0 0.0
    %853 = vmatprep.subr.mxu0 0.0
    %854 = vmatpush1.msra.mxu0 0.0
    %855 = vmatprep.subr.mxu0 0.0
    %856 = vmatpush1.msra.mxu0 0.0
    %857 = vmatprep.subr.mxu0 0.0
    %858 = vmatpush1.msra.mxu0 0.0
    %859 = vmatprep.subr.mxu0 0.0
    %860 = vmatpush1.msra.mxu0 0.0
    %861 = vmatprep.subr.mxu0 0.0
    %862 = vmatpush1.msra.mxu0 0.0
    %863 = vmatprep.subr.mxu0 0.0
    %864 = vmatpush1.msra.mxu0 0.0
    %865 = vmatprep.subr.mxu0 0.0
    %866 = vmatpush1.msra.mxu0 0.0
    %867 = vmatprep.subr.mxu0 0.0
    %868 = vmatpush1.msra.mxu0 0.0
    %869 = vmatprep.subr.mxu0 0.0
    %870 = vmatpush1.msra.mxu0 0.0
    %871 = vmatprep.subr.mxu0 0.0
    %872 = vmatpush1.msra.mxu0 0.0
    %873 = vmatprep.subr.mxu0 0.0
    %874 = vmatpush1.msra.mxu0 0.0
    %875 = vmatprep.subr.mxu0 0.0
    %876 = vmatpush1.msra.mxu0 0.0
    %877 = vmatprep.subr.mxu0 0.0
    %878 = vmatpush1.msra.mxu0 0.0
    %879 = vmatprep.mubr.f32.mxu0 0.0
    %880 = vmatmul.mubr.f32.gmra.mrb[0].mxu0 %v801
    %v881 = vpop.f32.mrb[0].mxu0
    %v882 = vadd.f32 %v777, %v881
    %v883 = vpop.f32.mrb[0].mxu0
    %884 = vmatprep.mubr.f32.mxu0 0.0
    %885 = vmatmul.mubr.f32.gmra.mrb[0].mxu0 %v804
    %v886 = vpop.f32.mrb[0].mxu0
    %v887 = vadd.f32 %v782, %v886
    %v888 = vpop.f32.mrb[0].mxu0
    %889 = vmatprep.mubr.f32.mxu0 0.0
    %890 = vmatmul.mubr.f32.gmra.mrb[0].mxu0 %v807
    %v891 = vpop.f32.mrb[0].mxu0
    %v892 = vadd.f32 %v787, %v891
    %v893 = vpop.f32.mrb[0].mxu0
    %894 = vmatprep.mubr.f32.mxu0 0.0
    %895 = vmatmul.mubr.f32.gmra.mrb[0].mxu0 %v810
    %v896 = vpop.f32.mrb[0].mxu0
    %v897 = vadd.f32 %v792, %v896
    %v898 = vpop.f32.mrb[0].mxu0
    %899 = vmatprep.mubr.f32.mxu0 0.0
    %900 = vmatmul.mubr.f32.gmra.mrb[0].mxu0 %v813
    %v901 = vpop.f32.mrb[0].mxu0
    %v902 = vadd.f32 %v797, %v901
    %v903 = vpop.f32.mrb[0].mxu0
    %904 = vdwg.mxu0
    %s905 = scalar_lea.vmem %s5, 80
    %v906 = vld [vmem:[%s905] sm:$0xff]
    %v907 = vld [vmem:[%s905 + $0x8] sm:$0xff]
    %v908 = vld [vmem:[%s905 + $0x10] sm:$0xff]
    %v909 = vld [vmem:[%s905 + $0x18] sm:$0xff]
    %v910 = vld [vmem:[%s905 + $0x20] sm:$0xff]
    %v912 = vsel %vm694, %v906, 0
    %v915 = vsel %vm694, %v907, 0
    %v918 = vsel %vm694, %v908, 0
    %v921 = vsel %vm694, %v909, 0
    %v924 = vsel %vm694, %v910, 0
    %926 = vmatprep.subr.mxu0 0.0
    %927 = vmatpush1.msra.mxu0 %v678
    %928 = vmatprep.subr.mxu0 0.0
    %929 = vmatpush1.msra.mxu0 %v679
    %930 = vmatprep.subr.mxu0 0.0
    %931 = vmatpush1.msra.mxu0 %v680
    %932 = vmatprep.subr.mxu0 0.0
    %933 = vmatpush1.msra.mxu0 %v681
    %934 = vmatprep.subr.mxu0 0.0
    %935 = vmatpush1.msra.mxu0 %v682
    %936 = vmatprep.subr.mxu0 0.0
    %937 = vmatpush1.msra.mxu0 0.0
    %938 = vmatprep.subr.mxu0 0.0
    %939 = vmatpush1.msra.mxu0 0.0
    %940 = vmatprep.subr.mxu0 0.0
    %941 = vmatpush1.msra.mxu0 0.0
    %942 = vmatprep.subr.mxu0 0.0
    %943 = vmatpush1.msra.mxu0 0.0
    %944 = vmatprep.subr.mxu0 0.0
    %945 = vmatpush1.msra.mxu0 0.0
    %946 = vmatprep.subr.mxu0 0.0
    %947 = vmatpush1.msra.mxu0 0.0
    %948 = vmatprep.subr.mxu0 0.0
    %949 = vmatpush1.msra.mxu0 0.0
    %950 = vmatprep.subr.mxu0 0.0
    %951 = vmatpush1.msra.mxu0 0.0
    %952 = vmatprep.subr.mxu0 0.0
    %953 = vmatpush1.msra.mxu0 0.0
    %954 = vmatprep.subr.mxu0 0.0
    %955 = vmatpush1.msra.mxu0 0.0
    %956 = vmatprep.subr.mxu0 0.0
    %957 = vmatpush1.msra.mxu0 0.0
    %958 = vmatprep.subr.mxu0 0.0
    %959 = vmatpush1.msra.mxu0 0.0
    %960 = vmatprep.subr.mxu0 0.0
    %961 = vmatpush1.msra.mxu0 0.0
    %962 = vmatprep.subr.mxu0 0.0
    %963 = vmatpush1.msra.mxu0 0.0
    %964 = vmatprep.subr.mxu0 0.0
    %965 = vmatpush1.msra.mxu0 0.0
    %966 = vmatprep.subr.mxu0 0.0
    %967 = vmatpush1.msra.mxu0 0.0
    %968 = vmatprep.subr.mxu0 0.0
    %969 = vmatpush1.msra.mxu0 0.0
    %970 = vmatprep.subr.mxu0 0.0
    %971 = vmatpush1.msra.mxu0 0.0
    %972 = vmatprep.subr.mxu0 0.0
    %973 = vmatpush1.msra.mxu0 0.0
    %974 = vmatprep.subr.mxu0 0.0
    %975 = vmatpush1.msra.mxu0 0.0
    %976 = vmatprep.subr.mxu0 0.0
    %977 = vmatpush1.msra.mxu0 0.0
    %978 = vmatprep.subr.mxu0 0.0
    %979 = vmatpush1.msra.mxu0 0.0
    %980 = vmatprep.subr.mxu0 0.0
    %981 = vmatpush1.msra.mxu0 0.0
    %982 = vmatprep.subr.mxu0 0.0
    %983 = vmatpush1.msra.mxu0 0.0
    %984 = vmatprep.subr.mxu0 0.0
    %985 = vmatpush1.msra.mxu0 0.0
    %986 = vmatprep.subr.mxu0 0.0
    %987 = vmatpush1.msra.mxu0 0.0
    %988 = vmatprep.subr.mxu0 0.0
    %989 = vmatpush1.msra.mxu0 0.0
    %990 = vmatprep.mubr.f32.mxu0 0.0
    %991 = vmatmul.mubr.f32.gmra.mrb[0].mxu0 %v912
    %v992 = vpop.f32.mrb[0].mxu0
    %v993 = vadd.f32 0.0, %v992
    %v994 = vpop.f32.mrb[0].mxu0
    %995 = vmatprep.mubr.f32.mxu0 0.0
    %996 = vmatmul.mubr.f32.gmra.mrb[0].mxu0 %v915
    %v997 = vpop.f32.mrb[0].mxu0
    %v998 = vadd.f32 0.0, %v997
    %v999 = vpop.f32.mrb[0].mxu0
    %1000 = vmatprep.mubr.f32.mxu0 0.0
    %1001 = vmatmul.mubr.f32.gmra.mrb[0].mxu0 %v918
    %v1002 = vpop.f32.mrb[0].mxu0
    %v1003 = vadd.f32 0.0, %v1002
    %v1004 = vpop.f32.mrb[0].mxu0
    %1005 = vmatprep.mubr.f32.mxu0 0.0
    %1006 = vmatmul.mubr.f32.gmra.mrb[0].mxu0 %v921
    %v1007 = vpop.f32.mrb[0].mxu0
    %v1008 = vadd.f32 0.0, %v1007
    %v1009 = vpop.f32.mrb[0].mxu0
    %1010 = vmatprep.mubr.f32.mxu0 0.0
    %1011 = vmatmul.mubr.f32.gmra.mrb[0].mxu0 %v924
    %v1012 = vpop.f32.mrb[0].mxu0
    %v1013 = vadd.f32 0.0, %v1012
    %v1014 = vpop.f32.mrb[0].mxu0
    %1015 = vdwg.mxu0
    %v1016 = vadd.f32 %v882, %v993
    %v1017 = vadd.f32 %v887, %v998
    %v1018 = vadd.f32 %v892, %v1003
    %v1019 = vadd.f32 %v897, %v1008
    %v1020 = vadd.f32 %v902, %v1013
    %v1021 = vld [vmem:[%s6] sm:$0xff]
    %v1022 = vld [vmem:[%s6 + $0x8] sm:$0xff]
    %v1023 = vld [vmem:[%s6 + $0x10] sm:$0xff]
    %v1024 = vld [vmem:[%s6 + $0x18] sm:$0xff]
    %v1025 = vld [vmem:[%s6 + $0x20] sm:$0xff]
    %1027 = vset.pattern.permute.xlu0 0
    %1028 = vperm.xlu0 %1027, %v1021
    %v1029 = vpop.permute.xlu0 %1028
    %1032 = vset.pattern.permute.xlu0 0
    %1033 = vperm.xlu0 %1032, %v1022
    %v1034 = vpop.permute.xlu0 %1033
    %1037 = vset.pattern.permute.xlu0 0
    %1038 = vperm.xlu0 %1037, %v1023
    %v1039 = vpop.permute.xlu0 %1038
    %1042 = vset.pattern.permute.xlu0 0
    %1043 = vperm.xlu0 %1042, %v1024
    %v1044 = vpop.permute.xlu0 %1043
    %1047 = vset.pattern.permute.xlu0 0
    %1048 = vperm.xlu0 %1047, %v1025
    %v1049 = vpop.permute.xlu0 %1048
    %v1051 = vadd.f32 %v1016, %v1029
    %v1052 = vadd.f32 %v1017, %v1034
    %v1053 = vadd.f32 %v1018, %v1039
    %v1054 = vadd.f32 %v1019, %v1044
    %v1055 = vadd.f32 %v1020, %v1049
    %v1056 = vmax.f32 %v1051, 0.0
    %v1057 = vmax.f32 %v1052, 0.0
    %v1058 = vmax.f32 %v1053, 0.0
    %v1059 = vmax.f32 %v1054, 0.0
    %v1060 = vmax.f32 %v1055, 0.0
    %1061 = vrot.lane.b32.xlu0 %v1056, 127
    %v1062 = vpop.permute.xlu0 %1061
    %1063 = vrot.lane.b32.xlu0 %v1057, 127
    %v1064 = vpop.permute.xlu0 %1063
    %1065 = vrot.lane.b32.xlu0 %v1058, 127
    %v1066 = vpop.permute.xlu0 %1065
    %1067 = vrot.lane.b32.xlu0 %v1059, 127
    %v1068 = vpop.permute.xlu0 %1067
    %1069 = vrot.lane.b32.xlu0 %v1060, 127
    %v1070 = vpop.permute.xlu0 %1069
    %v1071 = vmul.f32 %v1062, %v69
    %v1072 = vmul.f32 %v1064, %v69
    %v1073 = vmul.f32 %v1066, %v69
    %v1074 = vmul.f32 %v1068, %v69
    %v1075 = vmul.f32 %v1070, %v69
    %1076 = vrot.lane.b32.xlu0 %v1056, 1
    %v1077 = vpop.permute.xlu0 %1076
    %1078 = vrot.lane.b32.xlu0 %v1057, 1
    %v1079 = vpop.permute.xlu0 %1078
    %1080 = vrot.lane.b32.xlu0 %v1058, 1
    %v1081 = vpop.permute.xlu0 %1080
    %1082 = vrot.lane.b32.xlu0 %v1059, 1
    %v1083 = vpop.permute.xlu0 %1082
    %1084 = vrot.lane.b32.xlu0 %v1060, 1
    %v1085 = vpop.permute.xlu0 %1084
    %v1086 = vmul.f32 %v1077, %v72
    %v1087 = vmul.f32 %v1079, %v72
    %v1088 = vmul.f32 %v1081, %v72
    %v1089 = vmul.f32 %v1083, %v72
    %v1090 = vmul.f32 %v1085, %v72
    %s1091 = scalar_lea.vmem %s7, 40
    %v1092 = vld [vmem:[%s1091] sm:$0xff]
    %v1093 = vld [vmem:[%s1091 + $0x8] sm:$0xff]
    %v1094 = vld [vmem:[%s1091 + $0x10] sm:$0xff]
    %v1095 = vld [vmem:[%s1091 + $0x18] sm:$0xff]
    %v1096 = vld [vmem:[%s1091 + $0x20] sm:$0xff]
    %v1097 = vld [vmem:[%s7] sm:$0xff]
    %v1098 = vld [vmem:[%s7 + $0x8] sm:$0xff]
    %v1099 = vld [vmem:[%s7 + $0x10] sm:$0xff]
    %v1100 = vld [vmem:[%s7 + $0x18] sm:$0xff]
    %v1101 = vld [vmem:[%s7 + $0x20] sm:$0xff]
    %v1103 = vsel %vm694, %v1097, 0
    %v1106 = vsel %vm694, %v1098, 0
    %v1109 = vsel %vm694, %v1099, 0
    %v1112 = vsel %vm694, %v1100, 0
    %v1115 = vsel %vm694, %v1101, 0
    %1117 = vmatprep.subr.mxu0 0.0
    %1118 = vmatpush1.msra.mxu0 %v1071
    %1119 = vmatprep.subr.mxu0 0.0
    %1120 = vmatpush1.msra.mxu0 %v1072
    %1121 = vmatprep.subr.mxu0 0.0
    %1122 = vmatpush1.msra.mxu0 %v1073
    %1123 = vmatprep.subr.mxu0 0.0
    %1124 = vmatpush1.msra.mxu0 %v1074
    %1125 = vmatprep.subr.mxu0 0.0
    %1126 = vmatpush1.msra.mxu0 %v1075
    %1127 = vmatprep.subr.mxu0 0.0
    %1128 = vmatpush1.msra.mxu0 0.0
    %1129 = vmatprep.subr.mxu0 0.0
    %1130 = vmatpush1.msra.mxu0 0.0
    %1131 = vmatprep.subr.mxu0 0.0
    %1132 = vmatpush1.msra.mxu0 0.0
    %1133 = vmatprep.subr.mxu0 0.0
    %1134 = vmatpush1.msra.mxu0 0.0
    %1135 = vmatprep.subr.mxu0 0.0
    %1136 = vmatpush1.msra.mxu0 0.0
    %1137 = vmatprep.subr.mxu0 0.0
    %1138 = vmatpush1.msra.mxu0 0.0
    %1139 = vmatprep.subr.mxu0 0.0
    %1140 = vmatpush1.msra.mxu0 0.0
    %1141 = vmatprep.subr.mxu0 0.0
    %1142 = vmatpush1.msra.mxu0 0.0
    %1143 = vmatprep.subr.mxu0 0.0
    %1144 = vmatpush1.msra.mxu0 0.0
    %1145 = vmatprep.subr.mxu0 0.0
    %1146 = vmatpush1.msra.mxu0 0.0
    %1147 = vmatprep.subr.mxu0 0.0
    %1148 = vmatpush1.msra.mxu0 0.0
    %1149 = vmatprep.subr.mxu0 0.0
    %1150 = vmatpush1.msra.mxu0 0.0
    %1151 = vmatprep.subr.mxu0 0.0
    %1152 = vmatpush1.msra.mxu0 0.0
    %1153 = vmatprep.subr.mxu0 0.0
    %1154 = vmatpush1.msra.mxu0 0.0
    %1155 = vmatprep.subr.mxu0 0.0
    %1156 = vmatpush1.msra.mxu0 0.0
    %1157 = vmatprep.subr.mxu0 0.0
    %1158 = vmatpush1.msra.mxu0 0.0
    %1159 = vmatprep.subr.mxu0 0.0
    %1160 = vmatpush1.msra.mxu0 0.0
    %1161 = vmatprep.subr.mxu0 0.0
    %1162 = vmatpush1.msra.mxu0 0.0
    %1163 = vmatprep.subr.mxu0 0.0
    %1164 = vmatpush1.msra.mxu0 0.0
    %1165 = vmatprep.subr.mxu0 0.0
    %1166 = vmatpush1.msra.mxu0 0.0
    %1167 = vmatprep.subr.mxu0 0.0
    %1168 = vmatpush1.msra.mxu0 0.0
    %1169 = vmatprep.subr.mxu0 0.0
    %1170 = vmatpush1.msra.mxu0 0.0
    %1171 = vmatprep.subr.mxu0 0.0
    %1172 = vmatpush1.msra.mxu0 0.0
    %1173 = vmatprep.subr.mxu0 0.0
    %1174 = vmatpush1.msra.mxu0 0.0
    %1175 = vmatprep.subr.mxu0 0.0
    %1176 = vmatpush1.msra.mxu0 0.0
    %1177 = vmatprep.subr.mxu0 0.0
    %1178 = vmatpush1.msra.mxu0 0.0
    %1179 = vmatprep.subr.mxu0 0.0
    %1180 = vmatpush1.msra.mxu0 0.0
    %1181 = vmatprep.mubr.f32.mxu0 0.0
    %1182 = vmatmul.mubr.f32.gmra.mrb[0].mxu0 %v1103
    %v1183 = vpop.f32.mrb[0].mxu0
    %v1184 = vadd.f32 0.0, %v1183
    %v1185 = vpop.f32.mrb[0].mxu0
    %1186 = vmatprep.mubr.f32.mxu0 0.0
    %1187 = vmatmul.mubr.f32.gmra.mrb[0].mxu0 %v1106
    %v1188 = vpop.f32.mrb[0].mxu0
    %v1189 = vadd.f32 0.0, %v1188
    %v1190 = vpop.f32.mrb[0].mxu0
    %1191 = vmatprep.mubr.f32.mxu0 0.0
    %1192 = vmatmul.mubr.f32.gmra.mrb[0].mxu0 %v1109
    %v1193 = vpop.f32.mrb[0].mxu0
    %v1194 = vadd.f32 0.0, %v1193
    %v1195 = vpop.f32.mrb[0].mxu0
    %1196 = vmatprep.mubr.f32.mxu0 0.0
    %1197 = vmatmul.mubr.f32.gmra.mrb[0].mxu0 %v1112
    %v1198 = vpop.f32.mrb[0].mxu0
    %v1199 = vadd.f32 0.0, %v1198
    %v1200 = vpop.f32.mrb[0].mxu0
    %1201 = vmatprep.mubr.f32.mxu0 0.0
    %1202 = vmatmul.mubr.f32.gmra.mrb[0].mxu0 %v1115
    %v1203 = vpop.f32.mrb[0].mxu0
    %v1204 = vadd.f32 0.0, %v1203
    %v1205 = vpop.f32.mrb[0].mxu0
    %1206 = vdwg.mxu0
    %v1208 = vsel %vm694, %v1092, 0
    %v1211 = vsel %vm694, %v1093, 0
    %v1214 = vsel %vm694, %v1094, 0
    %v1217 = vsel %vm694, %v1095, 0
    %v1220 = vsel %vm694, %v1096, 0
    %1222 = vmatprep.subr.mxu0 0.0
    %1223 = vmatpush1.msra.mxu0 %v1056
    %1224 = vmatprep.subr.mxu0 0.0
    %1225 = vmatpush1.msra.mxu0 %v1057
    %1226 = vmatprep.subr.mxu0 0.0
    %1227 = vmatpush1.msra.mxu0 %v1058
    %1228 = vmatprep.subr.mxu0 0.0
    %1229 = vmatpush1.msra.mxu0 %v1059
    %1230 = vmatprep.subr.mxu0 0.0
    %1231 = vmatpush1.msra.mxu0 %v1060
    %1232 = vmatprep.subr.mxu0 0.0
    %1233 = vmatpush1.msra.mxu0 0.0
    %1234 = vmatprep.subr.mxu0 0.0
    %1235 = vmatpush1.msra.mxu0 0.0
    %1236 = vmatprep.subr.mxu0 0.0
    %1237 = vmatpush1.msra.mxu0 0.0
    %1238 = vmatprep.subr.mxu0 0.0
    %1239 = vmatpush1.msra.mxu0 0.0
    %1240 = vmatprep.subr.mxu0 0.0
    %1241 = vmatpush1.msra.mxu0 0.0
    %1242 = vmatprep.subr.mxu0 0.0
    %1243 = vmatpush1.msra.mxu0 0.0
    %1244 = vmatprep.subr.mxu0 0.0
    %1245 = vmatpush1.msra.mxu0 0.0
    %1246 = vmatprep.subr.mxu0 0.0
    %1247 = vmatpush1.msra.mxu0 0.0
    %1248 = vmatprep.subr.mxu0 0.0
    %1249 = vmatpush1.msra.mxu0 0.0
    %1250 = vmatprep.subr.mxu0 0.0
    %1251 = vmatpush1.msra.mxu0 0.0
    %1252 = vmatprep.subr.mxu0 0.0
    %1253 = vmatpush1.msra.mxu0 0.0
    %1254 = vmatprep.subr.mxu0 0.0
    %1255 = vmatpush1.msra.mxu0 0.0
    %1256 = vmatprep.subr.mxu0 0.0
    %1257 = vmatpush1.msra.mxu0 0.0
    %1258 = vmatprep.subr.mxu0 0.0
    %1259 = vmatpush1.msra.mxu0 0.0
    %1260 = vmatprep.subr.mxu0 0.0
    %1261 = vmatpush1.msra.mxu0 0.0
    %1262 = vmatprep.subr.mxu0 0.0
    %1263 = vmatpush1.msra.mxu0 0.0
    %1264 = vmatprep.subr.mxu0 0.0
    %1265 = vmatpush1.msra.mxu0 0.0
    %1266 = vmatprep.subr.mxu0 0.0
    %1267 = vmatpush1.msra.mxu0 0.0
    %1268 = vmatprep.subr.mxu0 0.0
    %1269 = vmatpush1.msra.mxu0 0.0
    %1270 = vmatprep.subr.mxu0 0.0
    %1271 = vmatpush1.msra.mxu0 0.0
    %1272 = vmatprep.subr.mxu0 0.0
    %1273 = vmatpush1.msra.mxu0 0.0
    %1274 = vmatprep.subr.mxu0 0.0
    %1275 = vmatpush1.msra.mxu0 0.0
    %1276 = vmatprep.subr.mxu0 0.0
    %1277 = vmatpush1.msra.mxu0 0.0
    %1278 = vmatprep.subr.mxu0 0.0
    %1279 = vmatpush1.msra.mxu0 0.0
    %1280 = vmatprep.subr.mxu0 0.0
    %1281 = vmatpush1.msra.mxu0 0.0
    %1282 = vmatprep.subr.mxu0 0.0
    %1283 = vmatpush1.msra.mxu0 0.0
    %1284 = vmatprep.subr.mxu0 0.0
    %1285 = vmatpush1.msra.mxu0 0.0
    %1286 = vmatprep.mubr.f32.mxu0 0.0
    %1287 = vmatmul.mubr.f32.gmra.mrb[0].mxu0 %v1208
    %v1288 = vpop.f32.mrb[0].mxu0
    %v1289 = vadd.f32 %v1184, %v1288
    %v1290 = vpop.f32.mrb[0].mxu0
    %1291 = vmatprep.mubr.f32.mxu0 0.0
    %1292 = vmatmul.mubr.f32.gmra.mrb[0].mxu0 %v1211
    %v1293 = vpop.f32.mrb[0].mxu0
    %v1294 = vadd.f32 %v1189, %v1293
    %v1295 = vpop.f32.mrb[0].mxu0
    %1296 = vmatprep.mubr.f32.mxu0 0.0
    %1297 = vmatmul.mubr.f32.gmra.mrb[0].mxu0 %v1214
    %v1298 = vpop.f32.mrb[0].mxu0
    %v1299 = vadd.f32 %v1194, %v1298
    %v1300 = vpop.f32.mrb[0].mxu0
    %1301 = vmatprep.mubr.f32.mxu0 0.0
    %1302 = vmatmul.mubr.f32.gmra.mrb[0].mxu0 %v1217
    %v1303 = vpop.f32.mrb[0].mxu0
    %v1304 = vadd.f32 %v1199, %v1303
    %v1305 = vpop.f32.mrb[0].mxu0
    %1306 = vmatprep.mubr.f32.mxu0 0.0
    %1307 = vmatmul.mubr.f32.gmra.mrb[0].mxu0 %v1220
    %v1308 = vpop.f32.mrb[0].mxu0
    %v1309 = vadd.f32 %v1204, %v1308
    %v1310 = vpop.f32.mrb[0].mxu0
    %1311 = vdwg.mxu0
    %s1312 = scalar_lea.vmem %s7, 80
    %v1313 = vld [vmem:[%s1312] sm:$0xff]
    %v1314 = vld [vmem:[%s1312 + $0x8] sm:$0xff]
    %v1315 = vld [vmem:[%s1312 + $0x10] sm:$0xff]
    %v1316 = vld [vmem:[%s1312 + $0x18] sm:$0xff]
    %v1317 = vld [vmem:[%s1312 + $0x20] sm:$0xff]
    %v1319 = vsel %vm694, %v1313, 0
    %v1322 = vsel %vm694, %v1314, 0
    %v1325 = vsel %vm694, %v1315, 0
    %v1328 = vsel %vm694, %v1316, 0
    %v1331 = vsel %vm694, %v1317, 0
    %1333 = vmatprep.subr.mxu0 0.0
    %1334 = vmatpush1.msra.mxu0 %v1086
    %1335 = vmatprep.subr.mxu0 0.0
    %1336 = vmatpush1.msra.mxu0 %v1087
    %1337 = vmatprep.subr.mxu0 0.0
    %1338 = vmatpush1.msra.mxu0 %v1088
    %1339 = vmatprep.subr.mxu0 0.0
    %1340 = vmatpush1.msra.mxu0 %v1089
    %1341 = vmatprep.subr.mxu0 0.0
    %1342 = vmatpush1.msra.mxu0 %v1090
    %1343 = vmatprep.subr.mxu0 0.0
    %1344 = vmatpush1.msra.mxu0 0.0
    %1345 = vmatprep.subr.mxu0 0.0
    %1346 = vmatpush1.msra.mxu0 0.0
    %1347 = vmatprep.subr.mxu0 0.0
    %1348 = vmatpush1.msra.mxu0 0.0
    %1349 = vmatprep.subr.mxu0 0.0
    %1350 = vmatpush1.msra.mxu0 0.0
    %1351 = vmatprep.subr.mxu0 0.0
    %1352 = vmatpush1.msra.mxu0 0.0
    %1353 = vmatprep.subr.mxu0 0.0
    %1354 = vmatpush1.msra.mxu0 0.0
    %1355 = vmatprep.subr.mxu0 0.0
    %1356 = vmatpush1.msra.mxu0 0.0
    %1357 = vmatprep.subr.mxu0 0.0
    %1358 = vmatpush1.msra.mxu0 0.0
    %1359 = vmatprep.subr.mxu0 0.0
    %1360 = vmatpush1.msra.mxu0 0.0
    %1361 = vmatprep.subr.mxu0 0.0
    %1362 = vmatpush1.msra.mxu0 0.0
    %1363 = vmatprep.subr.mxu0 0.0
    %1364 = vmatpush1.msra.mxu0 0.0
    %1365 = vmatprep.subr.mxu0 0.0
    %1366 = vmatpush1.msra.mxu0 0.0
    %1367 = vmatprep.subr.mxu0 0.0
    %1368 = vmatpush1.msra.mxu0 0.0
    %1369 = vmatprep.subr.mxu0 0.0
    %1370 = vmatpush1.msra.mxu0 0.0
    %1371 = vmatprep.subr.mxu0 0.0
    %1372 = vmatpush1.msra.mxu0 0.0
    %1373 = vmatprep.subr.mxu0 0.0
    %1374 = vmatpush1.msra.mxu0 0.0
    %1375 = vmatprep.subr.mxu0 0.0
    %1376 = vmatpush1.msra.mxu0 0.0
    %1377 = vmatprep.subr.mxu0 0.0
    %1378 = vmatpush1.msra.mxu0 0.0
    %1379 = vmatprep.subr.mxu0 0.0
    %1380 = vmatpush1.msra.mxu0 0.0
    %1381 = vmatprep.subr.mxu0 0.0
    %1382 = vmatpush1.msra.mxu0 0.0
    %1383 = vmatprep.subr.mxu0 0.0
    %1384 = vmatpush1.msra.mxu0 0.0
    %1385 = vmatprep.subr.mxu0 0.0
    %1386 = vmatpush1.msra.mxu0 0.0
    %1387 = vmatprep.subr.mxu0 0.0
    %1388 = vmatpush1.msra.mxu0 0.0
    %1389 = vmatprep.subr.mxu0 0.0
    %1390 = vmatpush1.msra.mxu0 0.0
    %1391 = vmatprep.subr.mxu0 0.0
    %1392 = vmatpush1.msra.mxu0 0.0
    %1393 = vmatprep.subr.mxu0 0.0
    %1394 = vmatpush1.msra.mxu0 0.0
    %1395 = vmatprep.subr.mxu0 0.0
    %1396 = vmatpush1.msra.mxu0 0.0
    %1397 = vmatprep.mubr.f32.mxu0 0.0
    %1398 = vmatmul.mubr.f32.gmra.mrb[0].mxu0 %v1319
    %v1399 = vpop.f32.mrb[0].mxu0
    %v1400 = vadd.f32 0.0, %v1399
    %v1401 = vpop.f32.mrb[0].mxu0
    %1402 = vmatprep.mubr.f32.mxu0 0.0
    %1403 = vmatmul.mubr.f32.gmra.mrb[0].mxu0 %v1322
    %v1404 = vpop.f32.mrb[0].mxu0
    %v1405 = vadd.f32 0.0, %v1404
    %v1406 = vpop.f32.mrb[0].mxu0
    %1407 = vmatprep.mubr.f32.mxu0 0.0
    %1408 = vmatmul.mubr.f32.gmra.mrb[0].mxu0 %v1325
    %v1409 = vpop.f32.mrb[0].mxu0
    %v1410 = vadd.f32 0.0, %v1409
    %v1411 = vpop.f32.mrb[0].mxu0
    %1412 = vmatprep.mubr.f32.mxu0 0.0
    %1413 = vmatmul.mubr.f32.gmra.mrb[0].mxu0 %v1328
    %v1414 = vpop.f32.mrb[0].mxu0
    %v1415 = vadd.f32 0.0, %v1414
    %v1416 = vpop.f32.mrb[0].mxu0
    %1417 = vmatprep.mubr.f32.mxu0 0.0
    %1418 = vmatmul.mubr.f32.gmra.mrb[0].mxu0 %v1331
    %v1419 = vpop.f32.mrb[0].mxu0
    %v1420 = vadd.f32 0.0, %v1419
    %v1421 = vpop.f32.mrb[0].mxu0
    %1422 = vdwg.mxu0
    %v1423 = vadd.f32 %v1289, %v1400
    %v1424 = vadd.f32 %v1294, %v1405
    %v1425 = vadd.f32 %v1299, %v1410
    %v1426 = vadd.f32 %v1304, %v1415
    %v1427 = vadd.f32 %v1309, %v1420
    %v1428 = vld [vmem:[%s8] sm:$0xff]
    %v1429 = vld [vmem:[%s8 + $0x8] sm:$0xff]
    %v1430 = vld [vmem:[%s8 + $0x10] sm:$0xff]
    %v1431 = vld [vmem:[%s8 + $0x18] sm:$0xff]
    %v1432 = vld [vmem:[%s8 + $0x20] sm:$0xff]
    %1434 = vset.pattern.permute.xlu0 0
    %1435 = vperm.xlu0 %1434, %v1428
    %v1436 = vpop.permute.xlu0 %1435
    %1439 = vset.pattern.permute.xlu0 0
    %1440 = vperm.xlu0 %1439, %v1429
    %v1441 = vpop.permute.xlu0 %1440
    %1444 = vset.pattern.permute.xlu0 0
    %1445 = vperm.xlu0 %1444, %v1430
    %v1446 = vpop.permute.xlu0 %1445
    %1449 = vset.pattern.permute.xlu0 0
    %1450 = vperm.xlu0 %1449, %v1431
    %v1451 = vpop.permute.xlu0 %1450
    %1454 = vset.pattern.permute.xlu0 0
    %1455 = vperm.xlu0 %1454, %v1432
    %v1456 = vpop.permute.xlu0 %1455
    %v1458 = vadd.f32 %v1423, %v1436
    %v1459 = vadd.f32 %v1424, %v1441
    %v1460 = vadd.f32 %v1425, %v1446
    %v1461 = vadd.f32 %v1426, %v1451
    %v1462 = vadd.f32 %v1427, %v1456
    %v1463 = vmax.f32 %v1458, 0.0
    %v1464 = vmax.f32 %v1459, 0.0
    %v1465 = vmax.f32 %v1460, 0.0
    %v1466 = vmax.f32 %v1461, 0.0
    %v1467 = vmax.f32 %v1462, 0.0
    %1468 = vrot.lane.b32.xlu0 %v1463, 127
    %v1469 = vpop.permute.xlu0 %1468
    %1470 = vrot.lane.b32.xlu0 %v1464, 127
    %v1471 = vpop.permute.xlu0 %1470
    %1472 = vrot.lane.b32.xlu0 %v1465, 127
    %v1473 = vpop.permute.xlu0 %1472
    %1474 = vrot.lane.b32.xlu0 %v1466, 127
    %v1475 = vpop.permute.xlu0 %1474
    %1476 = vrot.lane.b32.xlu0 %v1467, 127
    %v1477 = vpop.permute.xlu0 %1476
    %v1478 = vmul.f32 %v1469, %v69
    %v1479 = vmul.f32 %v1471, %v69
    %v1480 = vmul.f32 %v1473, %v69
    %v1481 = vmul.f32 %v1475, %v69
    %v1482 = vmul.f32 %v1477, %v69
    %1483 = vrot.lane.b32.xlu0 %v1463, 1
    %v1484 = vpop.permute.xlu0 %1483
    %1485 = vrot.lane.b32.xlu0 %v1464, 1
    %v1486 = vpop.permute.xlu0 %1485
    %1487 = vrot.lane.b32.xlu0 %v1465, 1
    %v1488 = vpop.permute.xlu0 %1487
    %1489 = vrot.lane.b32.xlu0 %v1466, 1
    %v1490 = vpop.permute.xlu0 %1489
    %1491 = vrot.lane.b32.xlu0 %v1467, 1
    %v1492 = vpop.permute.xlu0 %1491
    %v1493 = vmul.f32 %v1484, %v72
    %v1494 = vmul.f32 %v1486, %v72
    %v1495 = vmul.f32 %v1488, %v72
    %v1496 = vmul.f32 %v1490, %v72
    %v1497 = vmul.f32 %v1492, %v72
    %s1498 = scalar_lea.vmem %s9, 8
    %v1499 = vld [vmem:[%s1498] sm:$0xff]
    %v1500 = vld [vmem:[%s9] sm:$0xff]
    %v1502 = vsel %vm694, %v1500, 0
    %1504 = vmatprep.subr.mxu0 0.0
    %1505 = vmatpush1.msra.mxu0 %v1478
    %1506 = vmatprep.subr.mxu0 0.0
    %1507 = vmatpush1.msra.mxu0 %v1479
    %1508 = vmatprep.subr.mxu0 0.0
    %1509 = vmatpush1.msra.mxu0 %v1480
    %1510 = vmatprep.subr.mxu0 0.0
    %1511 = vmatpush1.msra.mxu0 %v1481
    %1512 = vmatprep.subr.mxu0 0.0
    %1513 = vmatpush1.msra.mxu0 %v1482
    %1514 = vmatprep.subr.mxu0 0.0
    %1515 = vmatpush1.msra.mxu0 0.0
    %1516 = vmatprep.subr.mxu0 0.0
    %1517 = vmatpush1.msra.mxu0 0.0
    %1518 = vmatprep.subr.mxu0 0.0
    %1519 = vmatpush1.msra.mxu0 0.0
    %1520 = vmatprep.subr.mxu0 0.0
    %1521 = vmatpush1.msra.mxu0 0.0
    %1522 = vmatprep.subr.mxu0 0.0
    %1523 = vmatpush1.msra.mxu0 0.0
    %1524 = vmatprep.subr.mxu0 0.0
    %1525 = vmatpush1.msra.mxu0 0.0
    %1526 = vmatprep.subr.mxu0 0.0
    %1527 = vmatpush1.msra.mxu0 0.0
    %1528 = vmatprep.subr.mxu0 0.0
    %1529 = vmatpush1.msra.mxu0 0.0
    %1530 = vmatprep.subr.mxu0 0.0
    %1531 = vmatpush1.msra.mxu0 0.0
    %1532 = vmatprep.subr.mxu0 0.0
    %1533 = vmatpush1.msra.mxu0 0.0
    %1534 = vmatprep.subr.mxu0 0.0
    %1535 = vmatpush1.msra.mxu0 0.0
    %1536 = vmatprep.subr.mxu0 0.0
    %1537 = vmatpush1.msra.mxu0 0.0
    %1538 = vmatprep.subr.mxu0 0.0
    %1539 = vmatpush1.msra.mxu0 0.0
    %1540 = vmatprep.subr.mxu0 0.0
    %1541 = vmatpush1.msra.mxu0 0.0
    %1542 = vmatprep.subr.mxu0 0.0
    %1543 = vmatpush1.msra.mxu0 0.0
    %1544 = vmatprep.subr.mxu0 0.0
    %1545 = vmatpush1.msra.mxu0 0.0
    %1546 = vmatprep.subr.mxu0 0.0
    %1547 = vmatpush1.msra.mxu0 0.0
    %1548 = vmatprep.subr.mxu0 0.0
    %1549 = vmatpush1.msra.mxu0 0.0
    %1550 = vmatprep.subr.mxu0 0.0
    %1551 = vmatpush1.msra.mxu0 0.0
    %1552 = vmatprep.subr.mxu0 0.0
    %1553 = vmatpush1.msra.mxu0 0.0
    %1554 = vmatprep.subr.mxu0 0.0
    %1555 = vmatpush1.msra.mxu0 0.0
    %1556 = vmatprep.subr.mxu0 0.0
    %1557 = vmatpush1.msra.mxu0 0.0
    %1558 = vmatprep.subr.mxu0 0.0
    %1559 = vmatpush1.msra.mxu0 0.0
    %1560 = vmatprep.subr.mxu0 0.0
    %1561 = vmatpush1.msra.mxu0 0.0
    %1562 = vmatprep.subr.mxu0 0.0
    %1563 = vmatpush1.msra.mxu0 0.0
    %1564 = vmatprep.subr.mxu0 0.0
    %1565 = vmatpush1.msra.mxu0 0.0
    %1566 = vmatprep.subr.mxu0 0.0
    %1567 = vmatpush1.msra.mxu0 0.0
    %1568 = vmatprep.mubr.f32.mxu0 0.0
    %1569 = vmatmul.mubr.f32.gmra.mrb[0].mxu0 %v1502
    %v1570 = vpop.f32.mrb[0].mxu0
    %v1571 = vadd.f32 0.0, %v1570
    %v1572 = vpop.f32.mrb[0].mxu0
    %1573 = vdwg.mxu0
    %v1575 = vsel %vm694, %v1499, 0
    %1577 = vmatprep.subr.mxu0 0.0
    %1578 = vmatpush1.msra.mxu0 %v1463
    %1579 = vmatprep.subr.mxu0 0.0
    %1580 = vmatpush1.msra.mxu0 %v1464
    %1581 = vmatprep.subr.mxu0 0.0
    %1582 = vmatpush1.msra.mxu0 %v1465
    %1583 = vmatprep.subr.mxu0 0.0
    %1584 = vmatpush1.msra.mxu0 %v1466
    %1585 = vmatprep.subr.mxu0 0.0
    %1586 = vmatpush1.msra.mxu0 %v1467
    %1587 = vmatprep.subr.mxu0 0.0
    %1588 = vmatpush1.msra.mxu0 0.0
    %1589 = vmatprep.subr.mxu0 0.0
    %1590 = vmatpush1.msra.mxu0 0.0
    %1591 = vmatprep.subr.mxu0 0.0
    %1592 = vmatpush1.msra.mxu0 0.0
    %1593 = vmatprep.subr.mxu0 0.0
    %1594 = vmatpush1.msra.mxu0 0.0
    %1595 = vmatprep.subr.mxu0 0.0
    %1596 = vmatpush1.msra.mxu0 0.0
    %1597 = vmatprep.subr.mxu0 0.0
    %1598 = vmatpush1.msra.mxu0 0.0
    %1599 = vmatprep.subr.mxu0 0.0
    %1600 = vmatpush1.msra.mxu0 0.0
    %1601 = vmatprep.subr.mxu0 0.0
    %1602 = vmatpush1.msra.mxu0 0.0
    %1603 = vmatprep.subr.mxu0 0.0
    %1604 = vmatpush1.msra.mxu0 0.0
    %1605 = vmatprep.subr.mxu0 0.0
    %1606 = vmatpush1.msra.mxu0 0.0
    %1607 = vmatprep.subr.mxu0 0.0
    %1608 = vmatpush1.msra.mxu0 0.0
    %1609 = vmatprep.subr.mxu0 0.0
    %1610 = vmatpush1.msra.mxu0 0.0
    %1611 = vmatprep.subr.mxu0 0.0
    %1612 = vmatpush1.msra.mxu0 0.0
    %1613 = vmatprep.subr.mxu0 0.0
    %1614 = vmatpush1.msra.mxu0 0.0
    %1615 = vmatprep.subr.mxu0 0.0
    %1616 = vmatpush1.msra.mxu0 0.0
    %1617 = vmatprep.subr.mxu0 0.0
    %1618 = vmatpush1.msra.mxu0 0.0
    %1619 = vmatprep.subr.mxu0 0.0
    %1620 = vmatpush1.msra.mxu0 0.0
    %1621 = vmatprep.subr.mxu0 0.0
    %1622 = vmatpush1.msra.mxu0 0.0
    %1623 = vmatprep.subr.mxu0 0.0
    %1624 = vmatpush1.msra.mxu0 0.0
    %1625 = vmatprep.subr.mxu0 0.0
    %1626 = vmatpush1.msra.mxu0 0.0
    %1627 = vmatprep.subr.mxu0 0.0
    %1628 = vmatpush1.msra.mxu0 0.0
    %1629 = vmatprep.subr.mxu0 0.0
    %1630 = vmatpush1.msra.mxu0 0.0
    %1631 = vmatprep.subr.mxu0 0.0
    %1632 = vmatpush1.msra.mxu0 0.0
    %1633 = vmatprep.subr.mxu0 0.0
    %1634 = vmatpush1.msra.mxu0 0.0
    %1635 = vmatprep.subr.mxu0 0.0
    %1636 = vmatpush1.msra.mxu0 0.0
    %1637 = vmatprep.subr.mxu0 0.0
    %1638 = vmatpush1.msra.mxu0 0.0
    %1639 = vmatprep.subr.mxu0 0.0
    %1640 = vmatpush1.msra.mxu0 0.0
    %1641 = vmatprep.mubr.f32.mxu0 0.0
    %1642 = vmatmul.mubr.f32.gmra.mrb[0].mxu0 %v1575
    %v1643 = vpop.f32.mrb[0].mxu0
    %v1644 = vadd.f32 %v1571, %v1643
    %v1645 = vpop.f32.mrb[0].mxu0
    %1646 = vdwg.mxu0
    %s1647 = scalar_lea.vmem %s9, 16
    %v1648 = vld [vmem:[%s1647] sm:$0xff]
    %v1650 = vsel %vm694, %v1648, 0
    %1652 = vmatprep.subr.mxu0 0.0
    %1653 = vmatpush1.msra.mxu0 %v1493
    %1654 = vmatprep.subr.mxu0 0.0
    %1655 = vmatpush1.msra.mxu0 %v1494
    %1656 = vmatprep.subr.mxu0 0.0
    %1657 = vmatpush1.msra.mxu0 %v1495
    %1658 = vmatprep.subr.mxu0 0.0
    %1659 = vmatpush1.msra.mxu0 %v1496
    %1660 = vmatprep.subr.mxu0 0.0
    %1661 = vmatpush1.msra.mxu0 %v1497
    %1662 = vmatprep.subr.mxu0 0.0
    %1663 = vmatpush1.msra.mxu0 0.0
    %1664 = vmatprep.subr.mxu0 0.0
    %1665 = vmatpush1.msra.mxu0 0.0
    %1666 = vmatprep.subr.mxu0 0.0
    %1667 = vmatpush1.msra.mxu0 0.0
    %1668 = vmatprep.subr.mxu0 0.0
    %1669 = vmatpush1.msra.mxu0 0.0
    %1670 = vmatprep.subr.mxu0 0.0
    %1671 = vmatpush1.msra.mxu0 0.0
    %1672 = vmatprep.subr.mxu0 0.0
    %1673 = vmatpush1.msra.mxu0 0.0
    %1674 = vmatprep.subr.mxu0 0.0
    %1675 = vmatpush1.msra.mxu0 0.0
    %1676 = vmatprep.subr.mxu0 0.0
    %1677 = vmatpush1.msra.mxu0 0.0
    %1678 = vmatprep.subr.mxu0 0.0
    %1679 = vmatpush1.msra.mxu0 0.0
    %1680 = vmatprep.subr.mxu0 0.0
    %1681 = vmatpush1.msra.mxu0 0.0
    %1682 = vmatprep.subr.mxu0 0.0
    %1683 = vmatpush1.msra.mxu0 0.0
    %1684 = vmatprep.subr.mxu0 0.0
    %1685 = vmatpush1.msra.mxu0 0.0
    %1686 = vmatprep.subr.mxu0 0.0
    %1687 = vmatpush1.msra.mxu0 0.0
    %1688 = vmatprep.subr.mxu0 0.0
    %1689 = vmatpush1.msra.mxu0 0.0
    %1690 = vmatprep.subr.mxu0 0.0
    %1691 = vmatpush1.msra.mxu0 0.0
    %1692 = vmatprep.subr.mxu0 0.0
    %1693 = vmatpush1.msra.mxu0 0.0
    %1694 = vmatprep.subr.mxu0 0.0
    %1695 = vmatpush1.msra.mxu0 0.0
    %1696 = vmatprep.subr.mxu0 0.0
    %1697 = vmatpush1.msra.mxu0 0.0
    %1698 = vmatprep.subr.mxu0 0.0
    %1699 = vmatpush1.msra.mxu0 0.0
    %1700 = vmatprep.subr.mxu0 0.0
    %1701 = vmatpush1.msra.mxu0 0.0
    %1702 = vmatprep.subr.mxu0 0.0
    %1703 = vmatpush1.msra.mxu0 0.0
    %1704 = vmatprep.subr.mxu0 0.0
    %1705 = vmatpush1.msra.mxu0 0.0
    %1706 = vmatprep.subr.mxu0 0.0
    %1707 = vmatpush1.msra.mxu0 0.0
    %1708 = vmatprep.subr.mxu0 0.0
    %1709 = vmatpush1.msra.mxu0 0.0
    %1710 = vmatprep.subr.mxu0 0.0
    %1711 = vmatpush1.msra.mxu0 0.0
    %1712 = vmatprep.subr.mxu0 0.0
    %1713 = vmatpush1.msra.mxu0 0.0
    %1714 = vmatprep.subr.mxu0 0.0
    %1715 = vmatpush1.msra.mxu0 0.0
    %1716 = vmatprep.mubr.f32.mxu0 0.0
    %1717 = vmatmul.mubr.f32.gmra.mrb[0].mxu0 %v1650
    %v1718 = vpop.f32.mrb[0].mxu0
    %v1719 = vadd.f32 0.0, %v1718
    %v1720 = vpop.f32.mrb[0].mxu0
    %1721 = vdwg.mxu0
    %v1722 = vadd.f32 %v1644, %v1719
    %v1723 = vld [vmem:[%s10] sm:$0xff]
    %1725 = vset.pattern.permute.xlu0 0
    %1726 = vperm.xlu0 %1725, %v1723
    %v1727 = vpop.permute.xlu0 %1726
    %v1729 = vadd.f32 %v1722, %v1727
    %v1730 = vmax.f32 %v1729, 0.0
    %1731 = vst [vmem:[#allocation5] sm:$0xff] %v1730
    // Predicated region
    $region50: #{tpu_custom_call.1} parent=1 // pred_check
      _
    $region51: #{tpu_custom_call.1} parent=1 // pred_check_branch
      %1733 = sbr.rel (0) target = $region53
    $region52: #{tpu_custom_call.1} parent=1 // pred_region
      %s1735 = ssub.s32 128, 128
      %1736 = vsyncadd [#allocation4], %s1735
      %s1738 = sshll.u32 [#allocation5], 4
      %s1739 = int_to_ptr.vmem [resolvable:$true] %s1738
      %1741 = dma.vmem_to_hbm [thread:$0]  %s1739, 128, %s11, [#allocation4]
    $region53: #{tpu_custom_call.1} parent=1 // pred_fallthru
      _
    // Predicated region
    $region54: #{tpu_custom_call.1} parent=1 // pred_check
      _
    $region55: #{tpu_custom_call.1} parent=1 // pred_check_branch
      %1743 = sbr.rel (0) target = $region57
    $region56: #{tpu_custom_call.1} parent=1 // pred_region
      %1744 = dma.done [#allocation4], 128
    $region57: #{tpu_custom_call.1} parent=1 // pred_fallthru
      _
    %1745 = vsyncpa [#allocation3], 1
    %1746 = vsyncpa [#allocation4], 1

</llo_original>
